<compile_context>
chip_gen: v6e
topology: v6e:2x2x1
jax: 0.10.0
libtpu: 0.0.40
codegen_flags: <defaults>
</compile_context>

<pallas_src>
import functools

import jax
import jax.numpy as jnp
from jax import lax
from jax.experimental import pallas as pl
from jax.experimental.pallas import tpu as pltpu


# ----------------------------------------------------------------------------
# Fused Pallas kernel: one batch element per grid step
# ----------------------------------------------------------------------------
def _fused_inter_attention_kernel(keys_ref, queries_ref, values_ref,
                                  wk_ref, wq_ref, wv_ref, wu_ref, bu_ref,
                                  o_ref, *, n_heads, d_keys):
    h, dk = n_heads, d_keys
    xk = keys_ref[0]       # (l, d_model) f32
    xq = queries_ref[0]
    xv = values_ref[0]
    l = xk.shape[0]
    r = l // dk            # row blocks per head (requires l % dk == 0)
    scale = float(dk) ** -0.5

    # --- projections: x @ w.T against torch-layout (out, in) weights ---------
    dn = (((1,), (1,)), ((), ()))   # contract last dims of both operands

    def proj(x, w_ref):
        return lax.dot_general(x.astype(jnp.bfloat16), w_ref[...], dn,
                               preferred_element_type=jnp.float32)

    a_k = proj(xk, wk_ref)          # (l, h*dk) f32
    a_q = proj(xq, wq_ref)
    a_v = proj(xv, wv_ref)

    # --- head rearrangement (row-permuted, transposed heads) -----------------
    # Module semantics: head[hi][li, ki] = A[(li*dk+ki) % l, hi*dk + (li*dk+ki)//l]
    # With sigma(li) = (li % r)*dk + li//r applied identically to Q/K/V rows
    # (attention is invariant under a common row permutation), the transposed
    # permuted head is
    #     T[hi, ki, c*dk + m] = A[c*dk + ki, hi*dk + m]
    # i.e. a lane-concat of r static (dk, dk) blocks of A.  Heads are stacked
    # on a leading axis so each attention matmul is one batched MXU call.
    def heads_T(a):
        mats = []
        for hi in range(h):
            blocks = [a[c * dk:(c + 1) * dk, hi * dk:(hi + 1) * dk]
                      for c in range(r)]
            mats.append(jnp.concatenate(blocks, axis=1)[None])   # (1, dk, l)
        return jnp.concatenate(mats, axis=0)                     # (h, dk, l)

    kT = heads_T(a_k)                 # unscaled keys (used for both scores & PV)
    qT = heads_T(a_q) * scale         # full dk^-0.5 folded into Q and V
    vT = heads_T(a_v) * scale

    kT_b = kT.astype(jnp.bfloat16)

    # --- dual scores (h, l, l): batched over heads, bf16 MXU / f32 accum -----
    d1 = jnp.einsum('hku,hkw->huw', qT.astype(jnp.bfloat16), kT_b,
                    preferred_element_type=jnp.float32)
    d2 = jnp.einsum('hku,hkw->huw', vT.astype(jnp.bfloat16), kT_b,
                    preferred_element_type=jnp.float32)

    def softmax_half(x):              # softmax(x, axis=-1) / 2, f32
        e = jnp.exp(x - jnp.max(x, axis=-1, keepdims=True))
        inv = pl.reciprocal(2.0 * jnp.sum(e, axis=-1, keepdims=True),
                            approx=True)
        return e * inv

    p = softmax_half(d1) + softmax_half(d2)          # (h, l, l) f32

    # --- single PV matmul: (p1 + p2) @ K, batched over heads -----------------
    outp = jnp.einsum('huw,hkw->huk', p.astype(jnp.bfloat16), kT_b,
                      preferred_element_type=jnp.float32)        # (h, l, dk)

    # --- recombine heads on the lane axis: (l, h*dk) -------------------------
    o_cat = jnp.concatenate([outp[hi] for hi in range(h)], axis=1)

    # --- unify heads: o @ wu.T + bu (torch-layout wu), rows still permuted ---
    f = lax.dot_general(o_cat.astype(jnp.bfloat16), wu_ref[...], dn,
                        preferred_element_type=jnp.float32) + bu_ref[...]

    # --- undo the row permutation, store one lane-dense (l, d_model) slab ----
    perm = [(li % r) * dk + (li // r) for li in range(l)]
    o_ref[0] = jnp.concatenate([f[s:s + 1, :] for s in perm], axis=0)


# ----------------------------------------------------------------------------
# Wrapper
# ----------------------------------------------------------------------------
def inter_attention_forward(keys, queries, values, params, n_heads):
    """Fused Pallas forward matching InterAttention.forward (torch weights)."""
    wk, wq, wv, wu, bu = params        # torch layout: (out_features, in_features)
    b, l, d_model = keys.shape
    h = n_heads
    dk = wk.shape[0] // h
    assert l % dk == 0, "fused head-rearrangement path assumes seq_len % d_keys == 0"
    # TODO(synk): general (l % dk != 0) rearrangement, and flash-style / K-tiled
    # variants with explicit VMEM budgeting for large l / d_model (needed on
    # v7x's 64 MiB VMEM) are not implemented for this toy configuration.

    kernel = functools.partial(_fused_inter_attention_kernel,
                               n_heads=h, d_keys=dk)

    act_spec = pl.BlockSpec((1, l, d_model), lambda i: (i, 0, 0))
    out = pl.pallas_call(
        kernel,
        out_shape=jax.ShapeDtypeStruct((b, l, d_model), jnp.float32),
        grid=(b,),
        in_specs=[act_spec, act_spec, act_spec,
                  pl.BlockSpec((h * dk, d_model), lambda i: (0, 0)),
                  pl.BlockSpec((h * dk, d_model), lambda i: (0, 0)),
                  pl.BlockSpec((h * dk, d_model), lambda i: (0, 0)),
                  pl.BlockSpec((d_model, h * dk), lambda i: (0, 0)),
                  pl.BlockSpec((1, d_model), lambda i: (0, 0))],
        out_specs=act_spec,
        compiler_params=pltpu.CompilerParams(
            dimension_semantics=("parallel",)),
    )(keys.astype(jnp.float32), queries.astype(jnp.float32),
      values.astype(jnp.float32),
      wk.astype(jnp.bfloat16), wq.astype(jnp.bfloat16), wv.astype(jnp.bfloat16),
      wu.astype(jnp.bfloat16), bu.reshape(1, d_model).astype(jnp.float32))
    return out


# ----------------------------------------------------------------------------
# Pure-JAX reference (mirrors the PyTorch forward exactly, f32)
# ----------------------------------------------------------------------------
def reference_forward(keys, queries, values, params, n_heads):
    wk, wq, wv, wu, bu = params
    b, l, d_model = keys.shape
    h = n_heads
    dk = d_model // h

    K = keys @ wk.T
    Q = queries @ wq.T
    V = values @ wv.T

    K = K.transpose(0, 2, 1).reshape(b * h, l, dk)
    Q = Q.transpose(0, 2, 1).reshape(b * h, l, dk)
    V = V.transpose(0, 2, 1).reshape(b * h, l, dk)

    scale = dk ** 0.25
    Qs = Q / scale
    Vs = V / scale
    Ks = K / scale

    d1 = jnp.einsum('blk,bmk->blm', Qs, Ks)
    d2 = jnp.einsum('blk,bmk->blm', Vs, Ks)
    d1 = jax.nn.softmax(d1, axis=2) / 2.0
    d2 = jax.nn.softmax(d2, axis=2) / 2.0

    out = jnp.einsum('blm,bmk->blk', d1, K) + jnp.einsum('blm,bmk->blk', d2, K)
    out = out.reshape(b, h, l, dk).transpose(0, 2, 1, 3).reshape(b, l, h * dk)
    return out @ wu.T + bu


# ----------------------------------------------------------------------------
if __name__ == "__main__":
    # small shapes consistent with the module: batch=2, seq=8, d_model=32, heads=8
    B, L, D_MODEL, N_HEADS = 2, 8, 32, 8
    DK = D_MODEL // N_HEADS

    key = jax.random.PRNGKey(0)
    k_wk, k_wq, k_wv, k_wu, k_bu, k_in1, k_in2, k_in3 = jax.random.split(key, 8)

    # deterministic normal(0, 0.1) init, torch weight layout (out_features, in_features)
    wk = 0.1 * jax.random.normal(k_wk, (N_HEADS * DK, D_MODEL), jnp.float32)
    wq = 0.1 * jax.random.normal(k_wq, (N_HEADS * DK, D_MODEL), jnp.float32)
    wv = 0.1 * jax.random.normal(k_wv, (N_HEADS * DK, D_MODEL), jnp.float32)
    wu = 0.1 * jax.random.normal(k_wu, (D_MODEL, N_HEADS * DK), jnp.float32)
    bu = 0.1 * jax.random.normal(k_bu, (D_MODEL,), jnp.float32)
    params = (wk, wq, wv, wu, bu)

    keys_in = jax.random.normal(k_in1, (B, L, D_MODEL), jnp.float32)
    queries_in = jax.random.normal(k_in2, (B, L, D_MODEL), jnp.float32)
    values_in = jax.random.normal(k_in3, (B, L, D_MODEL), jnp.float32)

    out = inter_attention_forward(keys_in, queries_in, values_in, params, N_HEADS)
    out = jax.block_until_ready(out)

    ref = reference_forward(keys_in, queries_in, values_in, params, N_HEADS)
    assert out.shape == (B, L, D_MODEL)
    assert jnp.allclose(out, ref, atol=2e-2, rtol=2e-2), (
        f"max abs diff {jnp.max(jnp.abs(out - ref))}")

    print("KERNEL_OK")
</pallas_src>

<mosaic_0001>
module attributes {stable_mosaic.version = 11 : i64} {
  func.func @_fused_inter_attention_kernel(%arg0: i32, %arg1: memref<1x8x32xf32, #tpu.memory_space<vmem>>, %arg2: memref<1x8x32xf32, #tpu.memory_space<vmem>>, %arg3: memref<1x8x32xf32, #tpu.memory_space<vmem>>, %arg4: memref<32x32xbf16, #tpu.memory_space<vmem>>, %arg5: memref<32x32xbf16, #tpu.memory_space<vmem>>, %arg6: memref<32x32xbf16, #tpu.memory_space<vmem>>, %arg7: memref<32x32xbf16, #tpu.memory_space<vmem>>, %arg8: memref<1x32xf32, #tpu.memory_space<vmem>>, %arg9: memref<1x8x32xf32, #tpu.memory_space<vmem>>) attributes {dimension_semantics = [#tpu.dimension_semantics<parallel>], iteration_bounds = array<i64: 2>, scalar_prefetch = 0 : i64, scratch_operands = 0 : i64, tpu.core_type = #tpu.core_type<tc>, window_params = [{transform_indices = @transform_0, window_bounds = array<i64: 1, 8, 32>}, {transform_indices = @transform_1, window_bounds = array<i64: 1, 8, 32>}, {transform_indices = @transform_2, window_bounds = array<i64: 1, 8, 32>}, {pipeline_mode = #tpu.pipeline_mode<synchronous>, transform_indices = @transform_3, window_bounds = array<i64: 32, 32>}, {pipeline_mode = #tpu.pipeline_mode<synchronous>, transform_indices = @transform_4, window_bounds = array<i64: 32, 32>}, {pipeline_mode = #tpu.pipeline_mode<synchronous>, transform_indices = @transform_5, window_bounds = array<i64: 32, 32>}, {pipeline_mode = #tpu.pipeline_mode<synchronous>, transform_indices = @transform_6, window_bounds = array<i64: 32, 32>}, {pipeline_mode = #tpu.pipeline_mode<synchronous>, transform_indices = @transform_7, window_bounds = array<i64: 1, 32>}, {transform_indices = @transform_8, window_bounds = array<i64: 1, 8, 32>}]} {
    %c0 = arith.constant 0 : index
    %c0_0 = arith.constant 0 : index
    %c0_1 = arith.constant 0 : index
    %0 = vector.load %arg1[%c0, %c0_0, %c0_1] : memref<1x8x32xf32, #tpu.memory_space<vmem>>, vector<1x8x32xf32>
    %1 = vector.shape_cast %0 : vector<1x8x32xf32> to vector<8x32xf32>
    %c0_2 = arith.constant 0 : index
    %c0_3 = arith.constant 0 : index
    %c0_4 = arith.constant 0 : index
    %2 = vector.load %arg2[%c0_2, %c0_3, %c0_4] : memref<1x8x32xf32, #tpu.memory_space<vmem>>, vector<1x8x32xf32>
    %3 = vector.shape_cast %2 : vector<1x8x32xf32> to vector<8x32xf32>
    %c0_5 = arith.constant 0 : index
    %c0_6 = arith.constant 0 : index
    %c0_7 = arith.constant 0 : index
    %4 = vector.load %arg3[%c0_5, %c0_6, %c0_7] : memref<1x8x32xf32, #tpu.memory_space<vmem>>, vector<1x8x32xf32>
    %5 = vector.shape_cast %4 : vector<1x8x32xf32> to vector<8x32xf32>
    %6 = arith.truncf %1 : vector<8x32xf32> to vector<8x32xbf16>
    %c0_8 = arith.constant 0 : index
    %c0_9 = arith.constant 0 : index
    %7 = vector.load %arg4[%c0_8, %c0_9] : memref<32x32xbf16, #tpu.memory_space<vmem>>, vector<32x32xbf16>
    %cst = arith.constant dense<0.000000e+00> : vector<8x32xf32>
    %8 = tpu.matmul %6, %7, %cst {dimension_numbers = #tpu.dot_dimension_numbers<[1], [1], [0], [0], [0, 0, 1, 0], [], []>} : vector<8x32xbf16>, vector<32x32xbf16>, vector<8x32xf32> -> vector<8x32xf32>
    %9 = arith.truncf %3 : vector<8x32xf32> to vector<8x32xbf16>
    %c0_10 = arith.constant 0 : index
    %c0_11 = arith.constant 0 : index
    %10 = vector.load %arg5[%c0_10, %c0_11] : memref<32x32xbf16, #tpu.memory_space<vmem>>, vector<32x32xbf16>
    %cst_12 = arith.constant dense<0.000000e+00> : vector<8x32xf32>
    %11 = tpu.matmul %9, %10, %cst_12 {dimension_numbers = #tpu.dot_dimension_numbers<[1], [1], [0], [0], [0, 0, 1, 0], [], []>} : vector<8x32xbf16>, vector<32x32xbf16>, vector<8x32xf32> -> vector<8x32xf32>
    %12 = arith.truncf %5 : vector<8x32xf32> to vector<8x32xbf16>
    %c0_13 = arith.constant 0 : index
    %c0_14 = arith.constant 0 : index
    %13 = vector.load %arg6[%c0_13, %c0_14] : memref<32x32xbf16, #tpu.memory_space<vmem>>, vector<32x32xbf16>
    %cst_15 = arith.constant dense<0.000000e+00> : vector<8x32xf32>
    %14 = tpu.matmul %12, %13, %cst_15 {dimension_numbers = #tpu.dot_dimension_numbers<[1], [1], [0], [0], [0, 0, 1, 0], [], []>} : vector<8x32xbf16>, vector<32x32xbf16>, vector<8x32xf32> -> vector<8x32xf32>
    %15 = vector.extract_strided_slice %8 {offsets = [0, 0], sizes = [4, 4], strides = [1, 1]} : vector<8x32xf32> to vector<4x4xf32>
    %16 = vector.extract_strided_slice %8 {offsets = [4, 0], sizes = [4, 4], strides = [1, 1]} : vector<8x32xf32> to vector<4x4xf32>
    %17 = tpu.concatenate %15, %16 in 1 : vector<4x4xf32>, vector<4x4xf32> -> vector<4x8xf32>
    %18 = vector.shape_cast %17 : vector<4x8xf32> to vector<1x4x8xf32>
    %19 = vector.extract_strided_slice %8 {offsets = [0, 4], sizes = [4, 4], strides = [1, 1]} : vector<8x32xf32> to vector<4x4xf32>
    %20 = vector.extract_strided_slice %8 {offsets = [4, 4], sizes = [4, 4], strides = [1, 1]} : vector<8x32xf32> to vector<4x4xf32>
    %21 = tpu.concatenate %19, %20 in 1 : vector<4x4xf32>, vector<4x4xf32> -> vector<4x8xf32>
    %22 = vector.shape_cast %21 : vector<4x8xf32> to vector<1x4x8xf32>
    %23 = vector.extract_strided_slice %8 {offsets = [0, 8], sizes = [4, 4], strides = [1, 1]} : vector<8x32xf32> to vector<4x4xf32>
    %24 = vector.extract_strided_slice %8 {offsets = [4, 8], sizes = [4, 4], strides = [1, 1]} : vector<8x32xf32> to vector<4x4xf32>
    %25 = tpu.concatenate %23, %24 in 1 : vector<4x4xf32>, vector<4x4xf32> -> vector<4x8xf32>
    %26 = vector.shape_cast %25 : vector<4x8xf32> to vector<1x4x8xf32>
    %27 = vector.extract_strided_slice %8 {offsets = [0, 12], sizes = [4, 4], strides = [1, 1]} : vector<8x32xf32> to vector<4x4xf32>
    %28 = vector.extract_strided_slice %8 {offsets = [4, 12], sizes = [4, 4], strides = [1, 1]} : vector<8x32xf32> to vector<4x4xf32>
    %29 = tpu.concatenate %27, %28 in 1 : vector<4x4xf32>, vector<4x4xf32> -> vector<4x8xf32>
    %30 = vector.shape_cast %29 : vector<4x8xf32> to vector<1x4x8xf32>
    %31 = vector.extract_strided_slice %8 {offsets = [0, 16], sizes = [4, 4], strides = [1, 1]} : vector<8x32xf32> to vector<4x4xf32>
    %32 = vector.extract_strided_slice %8 {offsets = [4, 16], sizes = [4, 4], strides = [1, 1]} : vector<8x32xf32> to vector<4x4xf32>
    %33 = tpu.concatenate %31, %32 in 1 : vector<4x4xf32>, vector<4x4xf32> -> vector<4x8xf32>
    %34 = vector.shape_cast %33 : vector<4x8xf32> to vector<1x4x8xf32>
    %35 = vector.extract_strided_slice %8 {offsets = [0, 20], sizes = [4, 4], strides = [1, 1]} : vector<8x32xf32> to vector<4x4xf32>
    %36 = vector.extract_strided_slice %8 {offsets = [4, 20], sizes = [4, 4], strides = [1, 1]} : vector<8x32xf32> to vector<4x4xf32>
    %37 = tpu.concatenate %35, %36 in 1 : vector<4x4xf32>, vector<4x4xf32> -> vector<4x8xf32>
    %38 = vector.shape_cast %37 : vector<4x8xf32> to vector<1x4x8xf32>
    %39 = vector.extract_strided_slice %8 {offsets = [0, 24], sizes = [4, 4], strides = [1, 1]} : vector<8x32xf32> to vector<4x4xf32>
    %40 = vector.extract_strided_slice %8 {offsets = [4, 24], sizes = [4, 4], strides = [1, 1]} : vector<8x32xf32> to vector<4x4xf32>
    %41 = tpu.concatenate %39, %40 in 1 : vector<4x4xf32>, vector<4x4xf32> -> vector<4x8xf32>
    %42 = vector.shape_cast %41 : vector<4x8xf32> to vector<1x4x8xf32>
    %43 = vector.extract_strided_slice %8 {offsets = [0, 28], sizes = [4, 4], strides = [1, 1]} : vector<8x32xf32> to vector<4x4xf32>
    %44 = vector.extract_strided_slice %8 {offsets = [4, 28], sizes = [4, 4], strides = [1, 1]} : vector<8x32xf32> to vector<4x4xf32>
    %45 = tpu.concatenate %43, %44 in 1 : vector<4x4xf32>, vector<4x4xf32> -> vector<4x8xf32>
    %46 = vector.shape_cast %45 : vector<4x8xf32> to vector<1x4x8xf32>
    %47 = tpu.concatenate %18, %22, %26, %30, %34, %38, %42, %46 in 0 : vector<1x4x8xf32>, vector<1x4x8xf32>, vector<1x4x8xf32>, vector<1x4x8xf32>, vector<1x4x8xf32>, vector<1x4x8xf32>, vector<1x4x8xf32>, vector<1x4x8xf32> -> vector<8x4x8xf32>
    %48 = vector.extract_strided_slice %11 {offsets = [0, 0], sizes = [4, 4], strides = [1, 1]} : vector<8x32xf32> to vector<4x4xf32>
    %49 = vector.extract_strided_slice %11 {offsets = [4, 0], sizes = [4, 4], strides = [1, 1]} : vector<8x32xf32> to vector<4x4xf32>
    %50 = tpu.concatenate %48, %49 in 1 : vector<4x4xf32>, vector<4x4xf32> -> vector<4x8xf32>
    %51 = vector.shape_cast %50 : vector<4x8xf32> to vector<1x4x8xf32>
    %52 = vector.extract_strided_slice %11 {offsets = [0, 4], sizes = [4, 4], strides = [1, 1]} : vector<8x32xf32> to vector<4x4xf32>
    %53 = vector.extract_strided_slice %11 {offsets = [4, 4], sizes = [4, 4], strides = [1, 1]} : vector<8x32xf32> to vector<4x4xf32>
    %54 = tpu.concatenate %52, %53 in 1 : vector<4x4xf32>, vector<4x4xf32> -> vector<4x8xf32>
    %55 = vector.shape_cast %54 : vector<4x8xf32> to vector<1x4x8xf32>
    %56 = vector.extract_strided_slice %11 {offsets = [0, 8], sizes = [4, 4], strides = [1, 1]} : vector<8x32xf32> to vector<4x4xf32>
    %57 = vector.extract_strided_slice %11 {offsets = [4, 8], sizes = [4, 4], strides = [1, 1]} : vector<8x32xf32> to vector<4x4xf32>
    %58 = tpu.concatenate %56, %57 in 1 : vector<4x4xf32>, vector<4x4xf32> -> vector<4x8xf32>
    %59 = vector.shape_cast %58 : vector<4x8xf32> to vector<1x4x8xf32>
    %60 = vector.extract_strided_slice %11 {offsets = [0, 12], sizes = [4, 4], strides = [1, 1]} : vector<8x32xf32> to vector<4x4xf32>
    %61 = vector.extract_strided_slice %11 {offsets = [4, 12], sizes = [4, 4], strides = [1, 1]} : vector<8x32xf32> to vector<4x4xf32>
    %62 = tpu.concatenate %60, %61 in 1 : vector<4x4xf32>, vector<4x4xf32> -> vector<4x8xf32>
    %63 = vector.shape_cast %62 : vector<4x8xf32> to vector<1x4x8xf32>
    %64 = vector.extract_strided_slice %11 {offsets = [0, 16], sizes = [4, 4], strides = [1, 1]} : vector<8x32xf32> to vector<4x4xf32>
    %65 = vector.extract_strided_slice %11 {offsets = [4, 16], sizes = [4, 4], strides = [1, 1]} : vector<8x32xf32> to vector<4x4xf32>
    %66 = tpu.concatenate %64, %65 in 1 : vector<4x4xf32>, vector<4x4xf32> -> vector<4x8xf32>
    %67 = vector.shape_cast %66 : vector<4x8xf32> to vector<1x4x8xf32>
    %68 = vector.extract_strided_slice %11 {offsets = [0, 20], sizes = [4, 4], strides = [1, 1]} : vector<8x32xf32> to vector<4x4xf32>
    %69 = vector.extract_strided_slice %11 {offsets = [4, 20], sizes = [4, 4], strides = [1, 1]} : vector<8x32xf32> to vector<4x4xf32>
    %70 = tpu.concatenate %68, %69 in 1 : vector<4x4xf32>, vector<4x4xf32> -> vector<4x8xf32>
    %71 = vector.shape_cast %70 : vector<4x8xf32> to vector<1x4x8xf32>
    %72 = vector.extract_strided_slice %11 {offsets = [0, 24], sizes = [4, 4], strides = [1, 1]} : vector<8x32xf32> to vector<4x4xf32>
    %73 = vector.extract_strided_slice %11 {offsets = [4, 24], sizes = [4, 4], strides = [1, 1]} : vector<8x32xf32> to vector<4x4xf32>
    %74 = tpu.concatenate %72, %73 in 1 : vector<4x4xf32>, vector<4x4xf32> -> vector<4x8xf32>
    %75 = vector.shape_cast %74 : vector<4x8xf32> to vector<1x4x8xf32>
    %76 = vector.extract_strided_slice %11 {offsets = [0, 28], sizes = [4, 4], strides = [1, 1]} : vector<8x32xf32> to vector<4x4xf32>
    %77 = vector.extract_strided_slice %11 {offsets = [4, 28], sizes = [4, 4], strides = [1, 1]} : vector<8x32xf32> to vector<4x4xf32>
    %78 = tpu.concatenate %76, %77 in 1 : vector<4x4xf32>, vector<4x4xf32> -> vector<4x8xf32>
    %79 = vector.shape_cast %78 : vector<4x8xf32> to vector<1x4x8xf32>
    %80 = tpu.concatenate %51, %55, %59, %63, %67, %71, %75, %79 in 0 : vector<1x4x8xf32>, vector<1x4x8xf32>, vector<1x4x8xf32>, vector<1x4x8xf32>, vector<1x4x8xf32>, vector<1x4x8xf32>, vector<1x4x8xf32>, vector<1x4x8xf32> -> vector<8x4x8xf32>
    %cst_16 = arith.constant 5.000000e-01 : f32
    %81 = vector.broadcast %cst_16 : f32 to vector<8x4x8xf32>
    %82 = arith.mulf %80, %81 : vector<8x4x8xf32>
    %83 = vector.extract_strided_slice %14 {offsets = [0, 0], sizes = [4, 4], strides = [1, 1]} : vector<8x32xf32> to vector<4x4xf32>
    %84 = vector.extract_strided_slice %14 {offsets = [4, 0], sizes = [4, 4], strides = [1, 1]} : vector<8x32xf32> to vector<4x4xf32>
    %85 = tpu.concatenate %83, %84 in 1 : vector<4x4xf32>, vector<4x4xf32> -> vector<4x8xf32>
    %86 = vector.shape_cast %85 : vector<4x8xf32> to vector<1x4x8xf32>
    %87 = vector.extract_strided_slice %14 {offsets = [0, 4], sizes = [4, 4], strides = [1, 1]} : vector<8x32xf32> to vector<4x4xf32>
    %88 = vector.extract_strided_slice %14 {offsets = [4, 4], sizes = [4, 4], strides = [1, 1]} : vector<8x32xf32> to vector<4x4xf32>
    %89 = tpu.concatenate %87, %88 in 1 : vector<4x4xf32>, vector<4x4xf32> -> vector<4x8xf32>
    %90 = vector.shape_cast %89 : vector<4x8xf32> to vector<1x4x8xf32>
    %91 = vector.extract_strided_slice %14 {offsets = [0, 8], sizes = [4, 4], strides = [1, 1]} : vector<8x32xf32> to vector<4x4xf32>
    %92 = vector.extract_strided_slice %14 {offsets = [4, 8], sizes = [4, 4], strides = [1, 1]} : vector<8x32xf32> to vector<4x4xf32>
    %93 = tpu.concatenate %91, %92 in 1 : vector<4x4xf32>, vector<4x4xf32> -> vector<4x8xf32>
    %94 = vector.shape_cast %93 : vector<4x8xf32> to vector<1x4x8xf32>
    %95 = vector.extract_strided_slice %14 {offsets = [0, 12], sizes = [4, 4], strides = [1, 1]} : vector<8x32xf32> to vector<4x4xf32>
    %96 = vector.extract_strided_slice %14 {offsets = [4, 12], sizes = [4, 4], strides = [1, 1]} : vector<8x32xf32> to vector<4x4xf32>
    %97 = tpu.concatenate %95, %96 in 1 : vector<4x4xf32>, vector<4x4xf32> -> vector<4x8xf32>
    %98 = vector.shape_cast %97 : vector<4x8xf32> to vector<1x4x8xf32>
    %99 = vector.extract_strided_slice %14 {offsets = [0, 16], sizes = [4, 4], strides = [1, 1]} : vector<8x32xf32> to vector<4x4xf32>
    %100 = vector.extract_strided_slice %14 {offsets = [4, 16], sizes = [4, 4], strides = [1, 1]} : vector<8x32xf32> to vector<4x4xf32>
    %101 = tpu.concatenate %99, %100 in 1 : vector<4x4xf32>, vector<4x4xf32> -> vector<4x8xf32>
    %102 = vector.shape_cast %101 : vector<4x8xf32> to vector<1x4x8xf32>
    %103 = vector.extract_strided_slice %14 {offsets = [0, 20], sizes = [4, 4], strides = [1, 1]} : vector<8x32xf32> to vector<4x4xf32>
    %104 = vector.extract_strided_slice %14 {offsets = [4, 20], sizes = [4, 4], strides = [1, 1]} : vector<8x32xf32> to vector<4x4xf32>
    %105 = tpu.concatenate %103, %104 in 1 : vector<4x4xf32>, vector<4x4xf32> -> vector<4x8xf32>
    %106 = vector.shape_cast %105 : vector<4x8xf32> to vector<1x4x8xf32>
    %107 = vector.extract_strided_slice %14 {offsets = [0, 24], sizes = [4, 4], strides = [1, 1]} : vector<8x32xf32> to vector<4x4xf32>
    %108 = vector.extract_strided_slice %14 {offsets = [4, 24], sizes = [4, 4], strides = [1, 1]} : vector<8x32xf32> to vector<4x4xf32>
    %109 = tpu.concatenate %107, %108 in 1 : vector<4x4xf32>, vector<4x4xf32> -> vector<4x8xf32>
    %110 = vector.shape_cast %109 : vector<4x8xf32> to vector<1x4x8xf32>
    %111 = vector.extract_strided_slice %14 {offsets = [0, 28], sizes = [4, 4], strides = [1, 1]} : vector<8x32xf32> to vector<4x4xf32>
    %112 = vector.extract_strided_slice %14 {offsets = [4, 28], sizes = [4, 4], strides = [1, 1]} : vector<8x32xf32> to vector<4x4xf32>
    %113 = tpu.concatenate %111, %112 in 1 : vector<4x4xf32>, vector<4x4xf32> -> vector<4x8xf32>
    %114 = vector.shape_cast %113 : vector<4x8xf32> to vector<1x4x8xf32>
    %115 = tpu.concatenate %86, %90, %94, %98, %102, %106, %110, %114 in 0 : vector<1x4x8xf32>, vector<1x4x8xf32>, vector<1x4x8xf32>, vector<1x4x8xf32>, vector<1x4x8xf32>, vector<1x4x8xf32>, vector<1x4x8xf32>, vector<1x4x8xf32> -> vector<8x4x8xf32>
    %cst_17 = arith.constant 5.000000e-01 : f32
    %116 = vector.broadcast %cst_17 : f32 to vector<8x4x8xf32>
    %117 = arith.mulf %115, %116 : vector<8x4x8xf32>
    %118 = arith.truncf %47 : vector<8x4x8xf32> to vector<8x4x8xbf16>
    %119 = arith.truncf %82 : vector<8x4x8xf32> to vector<8x4x8xbf16>
    "tpu.trace_start"() <{level = 10 : i32, message = "hku,hkw->huw"}> : () -> ()
    %cst_18 = arith.constant dense<0.000000e+00> : vector<8x8x8xf32>
    %120 = tpu.matmul %119, %118, %cst_18 {dimension_numbers = #tpu.dot_dimension_numbers<[1], [1], [2], [2], [0, 0, 0, 2, 1, 2], [0], [0]>} : vector<8x4x8xbf16>, vector<8x4x8xbf16>, vector<8x8x8xf32> -> vector<8x8x8xf32>
    "tpu.trace_stop"() : () -> ()
    %121 = arith.truncf %117 : vector<8x4x8xf32> to vector<8x4x8xbf16>
    "tpu.trace_start"() <{level = 10 : i32, message = "hku,hkw->huw"}> : () -> ()
    %cst_19 = arith.constant dense<0.000000e+00> : vector<8x8x8xf32>
    %122 = tpu.matmul %121, %118, %cst_19 {dimension_numbers = #tpu.dot_dimension_numbers<[1], [1], [2], [2], [0, 0, 0, 2, 1, 2], [0], [0]>} : vector<8x4x8xbf16>, vector<8x4x8xbf16>, vector<8x8x8xf32> -> vector<8x8x8xf32>
    "tpu.trace_stop"() : () -> ()
    %cst_20 = arith.constant dense<0xFF800000> : vector<8x8xf32>
    %123 = vector.multi_reduction <maximumf>, %120, %cst_20 [2] : vector<8x8x8xf32> to vector<8x8xf32>
    %124 = vector.shape_cast %123 : vector<8x8xf32> to vector<8x8x1xf32>
    %125 = vector.broadcast %124 : vector<8x8x1xf32> to vector<8x8x8xf32>
    %126 = arith.subf %120, %125 : vector<8x8x8xf32>
    %127 = math.exp %126 : vector<8x8x8xf32>
    %cst_21 = arith.constant dense<0.000000e+00> : vector<8x8xf32>
    %128 = vector.multi_reduction <add>, %127, %cst_21 [2] : vector<8x8x8xf32> to vector<8x8xf32>
    %129 = vector.shape_cast %128 : vector<8x8xf32> to vector<8x8x1xf32>
    %cst_22 = arith.constant 2.000000e+00 : f32
    %130 = vector.broadcast %cst_22 : f32 to vector<8x8x1xf32>
    %131 = arith.mulf %130, %129 : vector<8x8x1xf32>
    %132 = tpu.reciprocal %131 {approx = true} : vector<8x8x1xf32> -> vector<8x8x1xf32>
    %133 = vector.broadcast %132 : vector<8x8x1xf32> to vector<8x8x8xf32>
    %134 = arith.mulf %127, %133 : vector<8x8x8xf32>
    %cst_23 = arith.constant dense<0xFF800000> : vector<8x8xf32>
    %135 = vector.multi_reduction <maximumf>, %122, %cst_23 [2] : vector<8x8x8xf32> to vector<8x8xf32>
    %136 = vector.shape_cast %135 : vector<8x8xf32> to vector<8x8x1xf32>
    %137 = vector.broadcast %136 : vector<8x8x1xf32> to vector<8x8x8xf32>
    %138 = arith.subf %122, %137 : vector<8x8x8xf32>
    %139 = math.exp %138 : vector<8x8x8xf32>
    %cst_24 = arith.constant dense<0.000000e+00> : vector<8x8xf32>
    %140 = vector.multi_reduction <add>, %139, %cst_24 [2] : vector<8x8x8xf32> to vector<8x8xf32>
    %141 = vector.shape_cast %140 : vector<8x8xf32> to vector<8x8x1xf32>
    %cst_25 = arith.constant 2.000000e+00 : f32
    %142 = vector.broadcast %cst_25 : f32 to vector<8x8x1xf32>
    %143 = arith.mulf %142, %141 : vector<8x8x1xf32>
    %144 = tpu.reciprocal %143 {approx = true} : vector<8x8x1xf32> -> vector<8x8x1xf32>
    %145 = vector.broadcast %144 : vector<8x8x1xf32> to vector<8x8x8xf32>
    %146 = arith.mulf %139, %145 : vector<8x8x8xf32>
    %147 = arith.addf %134, %146 : vector<8x8x8xf32>
    %148 = arith.truncf %147 : vector<8x8x8xf32> to vector<8x8x8xbf16>
    "tpu.trace_start"() <{level = 10 : i32, message = "huw,hkw->huk"}> : () -> ()
    %cst_26 = arith.constant dense<0.000000e+00> : vector<8x8x4xf32>
    %149 = tpu.matmul %148, %118, %cst_26 {dimension_numbers = #tpu.dot_dimension_numbers<[2], [2], [1], [1], [0, 0, 0, 1, 1, 1], [0], [0]>} : vector<8x8x8xbf16>, vector<8x4x8xbf16>, vector<8x8x4xf32> -> vector<8x8x4xf32>
    "tpu.trace_stop"() : () -> ()
    %150 = vector.extract_strided_slice %149 {offsets = [0, 0, 0], sizes = [1, 8, 4], strides = [1, 1, 1]} : vector<8x8x4xf32> to vector<1x8x4xf32>
    %151 = vector.shape_cast %150 : vector<1x8x4xf32> to vector<8x4xf32>
    %152 = vector.extract_strided_slice %149 {offsets = [1, 0, 0], sizes = [1, 8, 4], strides = [1, 1, 1]} : vector<8x8x4xf32> to vector<1x8x4xf32>
    %153 = vector.shape_cast %152 : vector<1x8x4xf32> to vector<8x4xf32>
    %154 = vector.extract_strided_slice %149 {offsets = [2, 0, 0], sizes = [1, 8, 4], strides = [1, 1, 1]} : vector<8x8x4xf32> to vector<1x8x4xf32>
    %155 = vector.shape_cast %154 : vector<1x8x4xf32> to vector<8x4xf32>
    %156 = vector.extract_strided_slice %149 {offsets = [3, 0, 0], sizes = [1, 8, 4], strides = [1, 1, 1]} : vector<8x8x4xf32> to vector<1x8x4xf32>
    %157 = vector.shape_cast %156 : vector<1x8x4xf32> to vector<8x4xf32>
    %158 = vector.extract_strided_slice %149 {offsets = [4, 0, 0], sizes = [1, 8, 4], strides = [1, 1, 1]} : vector<8x8x4xf32> to vector<1x8x4xf32>
    %159 = vector.shape_cast %158 : vector<1x8x4xf32> to vector<8x4xf32>
    %160 = vector.extract_strided_slice %149 {offsets = [5, 0, 0], sizes = [1, 8, 4], strides = [1, 1, 1]} : vector<8x8x4xf32> to vector<1x8x4xf32>
    %161 = vector.shape_cast %160 : vector<1x8x4xf32> to vector<8x4xf32>
    %162 = vector.extract_strided_slice %149 {offsets = [6, 0, 0], sizes = [1, 8, 4], strides = [1, 1, 1]} : vector<8x8x4xf32> to vector<1x8x4xf32>
    %163 = vector.shape_cast %162 : vector<1x8x4xf32> to vector<8x4xf32>
    %164 = vector.extract_strided_slice %149 {offsets = [7, 0, 0], sizes = [1, 8, 4], strides = [1, 1, 1]} : vector<8x8x4xf32> to vector<1x8x4xf32>
    %165 = vector.shape_cast %164 : vector<1x8x4xf32> to vector<8x4xf32>
    %166 = tpu.concatenate %151, %153, %155, %157, %159, %161, %163, %165 in 1 : vector<8x4xf32>, vector<8x4xf32>, vector<8x4xf32>, vector<8x4xf32>, vector<8x4xf32>, vector<8x4xf32>, vector<8x4xf32>, vector<8x4xf32> -> vector<8x32xf32>
    %167 = arith.truncf %166 : vector<8x32xf32> to vector<8x32xbf16>
    %c0_27 = arith.constant 0 : index
    %c0_28 = arith.constant 0 : index
    %168 = vector.load %arg7[%c0_27, %c0_28] : memref<32x32xbf16, #tpu.memory_space<vmem>>, vector<32x32xbf16>
    %cst_29 = arith.constant dense<0.000000e+00> : vector<8x32xf32>
    %169 = tpu.matmul %167, %168, %cst_29 {dimension_numbers = #tpu.dot_dimension_numbers<[1], [1], [0], [0], [0, 0, 1, 0], [], []>} : vector<8x32xbf16>, vector<32x32xbf16>, vector<8x32xf32> -> vector<8x32xf32>
    %c0_30 = arith.constant 0 : index
    %c0_31 = arith.constant 0 : index
    %170 = vector.load %arg8[%c0_30, %c0_31] : memref<1x32xf32, #tpu.memory_space<vmem>>, vector<1x32xf32>
    %171 = vector.broadcast %170 : vector<1x32xf32> to vector<8x32xf32>
    %172 = arith.addf %169, %171 : vector<8x32xf32>
    %173 = vector.extract_strided_slice %172 {offsets = [0, 0], sizes = [1, 32], strides = [1, 1]} : vector<8x32xf32> to vector<1x32xf32>
    %174 = vector.extract_strided_slice %172 {offsets = [4, 0], sizes = [1, 32], strides = [1, 1]} : vector<8x32xf32> to vector<1x32xf32>
    %175 = vector.extract_strided_slice %172 {offsets = [1, 0], sizes = [1, 32], strides = [1, 1]} : vector<8x32xf32> to vector<1x32xf32>
    %176 = vector.extract_strided_slice %172 {offsets = [5, 0], sizes = [1, 32], strides = [1, 1]} : vector<8x32xf32> to vector<1x32xf32>
    %177 = vector.extract_strided_slice %172 {offsets = [2, 0], sizes = [1, 32], strides = [1, 1]} : vector<8x32xf32> to vector<1x32xf32>
    %178 = vector.extract_strided_slice %172 {offsets = [6, 0], sizes = [1, 32], strides = [1, 1]} : vector<8x32xf32> to vector<1x32xf32>
    %179 = vector.extract_strided_slice %172 {offsets = [3, 0], sizes = [1, 32], strides = [1, 1]} : vector<8x32xf32> to vector<1x32xf32>
    %180 = vector.extract_strided_slice %172 {offsets = [7, 0], sizes = [1, 32], strides = [1, 1]} : vector<8x32xf32> to vector<1x32xf32>
    %181 = tpu.concatenate %173, %174, %175, %176, %177, %178, %179, %180 in 0 : vector<1x32xf32>, vector<1x32xf32>, vector<1x32xf32>, vector<1x32xf32>, vector<1x32xf32>, vector<1x32xf32>, vector<1x32xf32>, vector<1x32xf32> -> vector<8x32xf32>
    %c0_32 = arith.constant 0 : index
    %c0_33 = arith.constant 0 : index
    %c0_34 = arith.constant 0 : index
    %182 = vector.load %arg9[%c0_32, %c0_33, %c0_34] : memref<1x8x32xf32, #tpu.memory_space<vmem>>, vector<1x8x32xf32>
    %183 = vector.shape_cast %182 : vector<1x8x32xf32> to vector<8x32xf32>
    %184 = vector.shape_cast %181 : vector<8x32xf32> to vector<1x8x32xf32>
    tpu.vector_store %arg9[%c0_32, %c0_33, %c0_34], %184 {strides = array<i32>} : memref<1x8x32xf32, #tpu.memory_space<vmem>>, vector<1x8x32xf32>,
    return
  }
  func.func @transform_0(%arg0: i32) -> (i32, i32, i32) {
    %c0_i32 = arith.constant 0 : i32
    %c0_i32_0 = arith.constant 0 : i32
    %c0_i32_1 = arith.constant 0 : i32
    return %arg0, %c0_i32, %c0_i32_0 : i32, i32, i32
  }
  func.func @transform_1(%arg0: i32) -> (i32, i32, i32) {
    %c0_i32 = arith.constant 0 : i32
    %c0_i32_0 = arith.constant 0 : i32
    %c0_i32_1 = arith.constant 0 : i32
    return %arg0, %c0_i32, %c0_i32_0 : i32, i32, i32
  }
  func.func @transform_2(%arg0: i32) -> (i32, i32, i32) {
    %c0_i32 = arith.constant 0 : i32
    %c0_i32_0 = arith.constant 0 : i32
    %c0_i32_1 = arith.constant 0 : i32
    return %arg0, %c0_i32, %c0_i32_0 : i32, i32, i32
  }
  func.func @transform_3(%arg0: i32) -> (i32, i32) {
    %c0_i32 = arith.constant 0 : i32
    %c0_i32_0 = arith.constant 0 : i32
    %c0_i32_1 = arith.constant 0 : i32
    return %c0_i32, %c0_i32_0 : i32, i32
  }
  func.func @transform_4(%arg0: i32) -> (i32, i32) {
    %c0_i32 = arith.constant 0 : i32
    %c0_i32_0 = arith.constant 0 : i32
    %c0_i32_1 = arith.constant 0 : i32
    return %c0_i32, %c0_i32_0 : i32, i32
  }
  func.func @transform_5(%arg0: i32) -> (i32, i32) {
    %c0_i32 = arith.constant 0 : i32
    %c0_i32_0 = arith.constant 0 : i32
    %c0_i32_1 = arith.constant 0 : i32
    return %c0_i32, %c0_i32_0 : i32, i32
  }
  func.func @transform_6(%arg0: i32) -> (i32, i32) {
    %c0_i32 = arith.constant 0 : i32
    %c0_i32_0 = arith.constant 0 : i32
    %c0_i32_1 = arith.constant 0 : i32
    return %c0_i32, %c0_i32_0 : i32, i32
  }
  func.func @transform_7(%arg0: i32) -> (i32, i32) {
    %c0_i32 = arith.constant 0 : i32
    %c0_i32_0 = arith.constant 0 : i32
    %c0_i32_1 = arith.constant 0 : i32
    return %c0_i32, %c0_i32_0 : i32, i32
  }
  func.func @transform_8(%arg0: i32) -> (i32, i32, i32) {
    %c0_i32 = arith.constant 0 : i32
    %c0_i32_0 = arith.constant 0 : i32
    %c0_i32_1 = arith.constant 0 : i32
    return %arg0, %c0_i32, %c0_i32_0 : i32, i32, i32
  }
}

</mosaic_0001>

<llo_original>
// kernel: tpu_custom_call.1
$region0: #{tpu_custom_call.1}
  #allocation0 [shape = 'u32[]', space=smem, size = 0x4, offset = 0x4, fixed_abs, tag = 'smem constant byte address 0x4 - core index']
  #allocation1 [shape = 'u32[144,128]{1,0:T(1,128)}', space=vmem, size = 0x12000, scoped, tag = 'internal scratch']
  %s0 = inlined_call_operand.hbm [shape: f32[2,8,32], index: 0, kind: input, shape index: {}]
  %s1 = inlined_call_operand.hbm [shape: f32[2,8,32], index: 1, kind: input, shape index: {}]
  %s2 = inlined_call_operand.hbm [shape: f32[2,8,32], index: 2, kind: input, shape index: {}]
  %s3 = inlined_call_operand.hbm [shape: bf16[32,32], index: 3, kind: input, shape index: {}]
  %s4 = inlined_call_operand.hbm [shape: bf16[32,32], index: 4, kind: input, shape index: {}]
  %s5 = inlined_call_operand.hbm [shape: bf16[32,32], index: 5, kind: input, shape index: {}]
  %s6 = inlined_call_operand.hbm [shape: bf16[32,32], index: 6, kind: input, shape index: {}]
  %s7 = inlined_call_operand.vmem [shape: f32[1,32], index: 7, kind: input, shape index: {}]
  %s8 = inlined_call_operand.hbm [shape: f32[2,8,32], index: 8, kind: output, shape index: {}]
  %s9 = sld [smem:[#allocation0]]
  $region93: #{tpu_custom_call.1} parent=0
    _
  %s11 = ssub.s32 1, %s9
  %s12 = scalar_select 0, %s11, %s9
  $region1: #{tpu_custom_call.1} parent=0
    #allocation2 [shape = 'u8[8192]{0}', space=vmem, size = 0x2000, scoped, tag = 'input window, operand 0']
    #allocation3 [shape = 's32[2]{0}', space=sflag, size = 0x8, scoped, tag = 'scoped memory for tpu_custom_call.1']
    #allocation4 [shape = 's32[2]{0}', space=sflag, size = 0x8, scoped, tag = 'scoped memory for tpu_custom_call.1']
    #allocation5 [shape = 'u8[8192]{0}', space=vmem, size = 0x2000, scoped, tag = 'input window, operand 1']
    #allocation6 [shape = 's32[2]{0}', space=sflag, size = 0x8, scoped, tag = 'scoped memory for tpu_custom_call.1']
    #allocation7 [shape = 'u8[8192]{0}', space=vmem, size = 0x2000, scoped, tag = 'input window, operand 2']
    #allocation8 [shape = 'u8[8192]{0}', space=vmem, size = 0x2000, scoped, tag = 'input window, operand 3, single buffered']
    #allocation9 [shape = 's32[1]{0}', space=sflag, size = 0x4, scoped, tag = 'scoped memory for tpu_custom_call.1']
    #allocation10 [shape = 'u8[8192]{0}', space=vmem, size = 0x2000, scoped, tag = 'input window, operand 4, single buffered']
    #allocation11 [shape = 'u8[8192]{0}', space=vmem, size = 0x2000, scoped, tag = 'input window, operand 5, single buffered']
    #allocation12 [shape = 's32[1]{0}', space=sflag, size = 0x4, scoped, tag = 'scoped memory for tpu_custom_call.1']
    #allocation13 [shape = 'u8[8192]{0}', space=vmem, size = 0x2000, scoped, tag = 'input window, operand 6, single buffered']
    #allocation14 [shape = 'u8[8192]{0}', space=vmem, size = 0x2000, scoped, tag = 'output window, operand 0']
    %13 = vsyncpa [#allocation3], 0
    %s14 = scalar_lea.sflag [#allocation3], 1
    %15 = vsyncpa %s14, 0
    %16 = vsyncpa [#allocation6], 0
    %s17 = scalar_lea.sflag [#allocation6], 1
    %18 = vsyncpa %s17, 0
    %19 = vsyncpa [#allocation9], 0
    %20 = vsyncpa [#allocation12], 0
    %21 = vsyncpa [#allocation4], 0
    %s22 = scalar_lea.sflag [#allocation4], 1
    %23 = vsyncpa %s22, 0
    loop: start=0, step=1, limit=4
    $region2: #{tpu_custom_call.1} parent=1 // loop_pre_header
      _
    $region3: #{tpu_custom_call.1} parent=1 // loop_header
      %s25 = sphi 0, %s29
      %p26 = scmp.ge.s32.totalorder %s25, 4
      %s35 = sphi 0, %s37
      %s38 = sphi 0, %s35
      %s39 = sphi 0, %s38
      %s55 = sphi 0, %s39
      %s61 = sphi 0, %s63
      %s64 = sphi 0, %s61
      %s65 = sphi 0, %s64
      %s81 = sphi 0, %s65
      %s87 = sphi 0, %s89
      %s90 = sphi 0, %s87
      %s91 = sphi 0, %s90
      %s107 = sphi 0, %s91
      %s111 = sphi 0, %s111
      %s113 = sphi 0, %s111
      %s114 = sphi 0, %s113
      %s128 = sphi 0, %s114
      %s132 = sphi 0, %s132
      %s134 = sphi 0, %s132
      %s135 = sphi 0, %s134
      %s149 = sphi 0, %s135
      %s153 = sphi 0, %s153
      %s155 = sphi 0, %s153
      %s156 = sphi 0, %s155
      %s170 = sphi 0, %s156
      %s174 = sphi 0, %s174
      %s176 = sphi 0, %s174
      %s177 = sphi 0, %s176
      %s191 = sphi 0, %s177
      %s195 = sphi 0, %s195
      %s197 = sphi 0, %s195
      %s198 = sphi 0, %s197
      %s212 = sphi 0, %s198
      %s218 = sphi 0, %s220
      %s221 = sphi 0, %s218
      %s222 = sphi 0, %s221
      %s238 = sphi 0, %s222
    $region4: #{tpu_custom_call.1} parent=1 // loop_header_branch
      %28 = sbr.rel (%p26) target = $region8
    $region5: #{tpu_custom_call.1} parent=1 // loop_body
      %s30 = ssub.s32 %s25, 1
      %s31 = ssub.s32 %s25, 2
      %s32 = sadd.s32 %s25, 1
      %s33 = ssub.s32 %s25, %s32
      %p34 = scmp.eq.s32.totalorder %s33, 0
      %s36 = sadd.s32 %s35, 1
      %s37 = scalar_select %p34, %s35, %s36
      %p40 = pneg %p34
      %p41 = scmp.eq.s32.totalorder %s25, 1
      %p42 = por %p40, %p41
      %p43 = scmp.ne.s32.totalorder %s35, %s38
      %p44 = scmp.eq.s32.totalorder %s25, 0
      %p45 = por %p43, %p44
      %p46 = scmp.ne.s32.totalorder %s35, %s38
      %p47 = scmp.eq.s32.totalorder %s30, 1
      %p48 = por %p46, %p47
      %p49 = scmp.ne.s32.totalorder %s38, %s39
      %p50 = scmp.eq.s32.totalorder %s30, 0
      %p51 = por %p49, %p50
      %p52 = scmp.ne.s32.totalorder %s38, %s39
      %p53 = scmp.eq.s32.totalorder %s31, 1
      %p54 = por %p52, %p53
      %p56 = scmp.ne.s32.totalorder %s39, %s55
      %p57 = scmp.eq.s32.totalorder %s31, 0
      %p58 = por %p56, %p57
      %s59 = ssub.s32 %s25, %s32
      %p60 = scmp.eq.s32.totalorder %s59, 0
      %s62 = sadd.s32 %s61, 1
      %s63 = scalar_select %p60, %s61, %s62
      %p66 = pneg %p60
      %p67 = scmp.eq.s32.totalorder %s25, 1
      %p68 = por %p66, %p67
      %p69 = scmp.ne.s32.totalorder %s61, %s64
      %p70 = scmp.eq.s32.totalorder %s25, 0
      %p71 = por %p69, %p70
      %p72 = scmp.ne.s32.totalorder %s61, %s64
      %p73 = scmp.eq.s32.totalorder %s30, 1
      %p74 = por %p72, %p73
      %p75 = scmp.ne.s32.totalorder %s64, %s65
      %p76 = scmp.eq.s32.totalorder %s30, 0
      %p77 = por %p75, %p76
      %p78 = scmp.ne.s32.totalorder %s64, %s65
      %p79 = scmp.eq.s32.totalorder %s31, 1
      %p80 = por %p78, %p79
      %p82 = scmp.ne.s32.totalorder %s65, %s81
      %p83 = scmp.eq.s32.totalorder %s31, 0
      %p84 = por %p82, %p83
      %s85 = ssub.s32 %s25, %s32
      %p86 = scmp.eq.s32.totalorder %s85, 0
      %s88 = sadd.s32 %s87, 1
      %s89 = scalar_select %p86, %s87, %s88
      %p92 = pneg %p86
      %p93 = scmp.eq.s32.totalorder %s25, 1
      %p94 = por %p92, %p93
      %p95 = scmp.ne.s32.totalorder %s87, %s90
      %p96 = scmp.eq.s32.totalorder %s25, 0
      %p97 = por %p95, %p96
      %p98 = scmp.ne.s32.totalorder %s87, %s90
      %p99 = scmp.eq.s32.totalorder %s30, 1
      %p100 = por %p98, %p99
      %p101 = scmp.ne.s32.totalorder %s90, %s91
      %p102 = scmp.eq.s32.totalorder %s30, 0
      %p103 = por %p101, %p102
      %p104 = scmp.ne.s32.totalorder %s90, %s91
      %p105 = scmp.eq.s32.totalorder %s31, 1
      %p106 = por %p104, %p105
      %p108 = scmp.ne.s32.totalorder %s91, %s107
      %p109 = scmp.eq.s32.totalorder %s31, 0
      %p110 = por %p108, %p109
      %s112 = sadd.s32 %s111, 1
      %p115 = scmp.eq.s32.totalorder %s25, 1
      %p116 = scmp.ne.s32.totalorder %s111, %s113
      %p117 = scmp.eq.s32.totalorder %s25, 0
      %p118 = por %p116, %p117
      %p119 = scmp.ne.s32.totalorder %s111, %s113
      %p120 = scmp.eq.s32.totalorder %s30, 1
      %p121 = por %p119, %p120
      %p122 = scmp.ne.s32.totalorder %s113, %s114
      %p123 = scmp.eq.s32.totalorder %s30, 0
      %p124 = por %p122, %p123
      %p125 = scmp.ne.s32.totalorder %s113, %s114
      %p126 = scmp.eq.s32.totalorder %s31, 1
      %p127 = por %p125, %p126
      %p129 = scmp.ne.s32.totalorder %s114, %s128
      %p130 = scmp.eq.s32.totalorder %s31, 0
      %p131 = por %p129, %p130
      %s133 = sadd.s32 %s132, 1
      %p136 = scmp.eq.s32.totalorder %s25, 1
      %p137 = scmp.ne.s32.totalorder %s132, %s134
      %p138 = scmp.eq.s32.totalorder %s25, 0
      %p139 = por %p137, %p138
      %p140 = scmp.ne.s32.totalorder %s132, %s134
      %p141 = scmp.eq.s32.totalorder %s30, 1
      %p142 = por %p140, %p141
      %p143 = scmp.ne.s32.totalorder %s134, %s135
      %p144 = scmp.eq.s32.totalorder %s30, 0
      %p145 = por %p143, %p144
      %p146 = scmp.ne.s32.totalorder %s134, %s135
      %p147 = scmp.eq.s32.totalorder %s31, 1
      %p148 = por %p146, %p147
      %p150 = scmp.ne.s32.totalorder %s135, %s149
      %p151 = scmp.eq.s32.totalorder %s31, 0
      %p152 = por %p150, %p151
      %s154 = sadd.s32 %s153, 1
      %p157 = scmp.eq.s32.totalorder %s25, 1
      %p158 = scmp.ne.s32.totalorder %s153, %s155
      %p159 = scmp.eq.s32.totalorder %s25, 0
      %p160 = por %p158, %p159
      %p161 = scmp.ne.s32.totalorder %s153, %s155
      %p162 = scmp.eq.s32.totalorder %s30, 1
      %p163 = por %p161, %p162
      %p164 = scmp.ne.s32.totalorder %s155, %s156
      %p165 = scmp.eq.s32.totalorder %s30, 0
      %p166 = por %p164, %p165
      %p167 = scmp.ne.s32.totalorder %s155, %s156
      %p168 = scmp.eq.s32.totalorder %s31, 1
      %p169 = por %p167, %p168
      %p171 = scmp.ne.s32.totalorder %s156, %s170
      %p172 = scmp.eq.s32.totalorder %s31, 0
      %p173 = por %p171, %p172
      %s175 = sadd.s32 %s174, 1
      %p178 = scmp.eq.s32.totalorder %s25, 1
      %p179 = scmp.ne.s32.totalorder %s174, %s176
      %p180 = scmp.eq.s32.totalorder %s25, 0
      %p181 = por %p179, %p180
      %p182 = scmp.ne.s32.totalorder %s174, %s176
      %p183 = scmp.eq.s32.totalorder %s30, 1
      %p184 = por %p182, %p183
      %p185 = scmp.ne.s32.totalorder %s176, %s177
      %p186 = scmp.eq.s32.totalorder %s30, 0
      %p187 = por %p185, %p186
      %p188 = scmp.ne.s32.totalorder %s176, %s177
      %p189 = scmp.eq.s32.totalorder %s31, 1
      %p190 = por %p188, %p189
      %p192 = scmp.ne.s32.totalorder %s177, %s191
      %p193 = scmp.eq.s32.totalorder %s31, 0
      %p194 = por %p192, %p193
      %s196 = sadd.s32 %s195, 1
      %p199 = scmp.eq.s32.totalorder %s25, 1
      %p200 = scmp.ne.s32.totalorder %s195, %s197
      %p201 = scmp.eq.s32.totalorder %s25, 0
      %p202 = por %p200, %p201
      %p203 = scmp.ne.s32.totalorder %s195, %s197
      %p204 = scmp.eq.s32.totalorder %s30, 1
      %p205 = por %p203, %p204
      %p206 = scmp.ne.s32.totalorder %s197, %s198
      %p207 = scmp.eq.s32.totalorder %s30, 0
      %p208 = por %p206, %p207
      %p209 = scmp.ne.s32.totalorder %s197, %s198
      %p210 = scmp.eq.s32.totalorder %s31, 1
      %p211 = por %p209, %p210
      %p213 = scmp.ne.s32.totalorder %s198, %s212
      %p214 = scmp.eq.s32.totalorder %s31, 0
      %p215 = por %p213, %p214
      %s216 = ssub.s32 %s25, %s32
      %p217 = scmp.eq.s32.totalorder %s216, 0
      %s219 = sadd.s32 %s218, 1
      %s220 = scalar_select %p217, %s218, %s219
      %p223 = pneg %p217
      %p224 = scmp.eq.s32.totalorder %s25, 1
      %p225 = por %p223, %p224
      %p226 = scmp.ne.s32.totalorder %s218, %s221
      %p227 = scmp.eq.s32.totalorder %s25, 0
      %p228 = por %p226, %p227
      %p229 = scmp.ne.s32.totalorder %s218, %s221
      %p230 = scmp.eq.s32.totalorder %s30, 1
      %p231 = por %p229, %p230
      %p232 = scmp.ne.s32.totalorder %s221, %s222
      %p233 = scmp.eq.s32.totalorder %s30, 0
      %p234 = por %p232, %p233
      %p235 = scmp.ne.s32.totalorder %s221, %s222
      %p236 = scmp.eq.s32.totalorder %s31, 1
      %p237 = por %p235, %p236
      %p239 = scmp.ne.s32.totalorder %s222, %s238
      %p240 = scmp.eq.s32.totalorder %s31, 0
      %p241 = por %p239, %p240
      %p242 = scmp.le.s32.totalorder 1, %s25
      %p243 = scmp.lt.s32.totalorder %s25, 3
      %p244 = pnand %p242, %p243
      %p245 = pneg %p244
      // Predicated region
      $region9: #{tpu_custom_call.1} parent=5 // pred_check
        _
      $region10: #{tpu_custom_call.1} parent=5 // pred_check_branch
        %247 = sbr.rel (%p244) target = $region12
      $region11: #{tpu_custom_call.1} parent=5 // pred_region
        %s248 = ssub.s32 %s25, 1
        // Predicated region
        $region13: #{tpu_custom_call.1} parent=11 // pred_check
          %p249 = pneg %p124
        $region14: #{tpu_custom_call.1} parent=11 // pred_check_branch
          %251 = sbr.rel (%p249) target = $region16
        $region15: #{tpu_custom_call.1} parent=11 // pred_region
          %s253 = ssub.s32 256, 256
          %254 = vsyncadd [#allocation9], %s253
          %s255 = sshll.u32 [#allocation8], 4
          %s256 = int_to_ptr.vmem [resolvable:$true] %s255
          %261 = dma.hbm_to_vmem [thread:$0]  %s3, 256, %s256, [#allocation9], 64, 64, 4
        $region16: #{tpu_custom_call.1} parent=11 // pred_fallthru
          _
        // Predicated region
        $region17: #{tpu_custom_call.1} parent=11 // pred_check
          %p262 = pneg %p145
        $region18: #{tpu_custom_call.1} parent=11 // pred_check_branch
          %264 = sbr.rel (%p262) target = $region20
        $region19: #{tpu_custom_call.1} parent=11 // pred_region
          %s266 = ssub.s32 256, 256
          %267 = vsyncadd [#allocation9], %s266
          %s268 = sshll.u32 [#allocation10], 4
          %s269 = int_to_ptr.vmem [resolvable:$true] %s268
          %274 = dma.hbm_to_vmem [thread:$0]  %s4, 256, %s269, [#allocation9], 64, 64, 4
        $region20: #{tpu_custom_call.1} parent=11 // pred_fallthru
          _
        // Predicated region
        $region21: #{tpu_custom_call.1} parent=11 // pred_check
          %p275 = pneg %p166
        $region22: #{tpu_custom_call.1} parent=11 // pred_check_branch
          %277 = sbr.rel (%p275) target = $region24
        $region23: #{tpu_custom_call.1} parent=11 // pred_region
          %s279 = ssub.s32 256, 256
          %280 = vsyncadd [#allocation12], %s279
          %s281 = sshll.u32 [#allocation11], 4
          %s282 = int_to_ptr.vmem [resolvable:$true] %s281
          %287 = dma.hbm_to_vmem [thread:$0]  %s5, 256, %s282, [#allocation12], 64, 64, 4
        $region24: #{tpu_custom_call.1} parent=11 // pred_fallthru
          _
        // Predicated region
        $region25: #{tpu_custom_call.1} parent=11 // pred_check
          %p288 = pneg %p187
        $region26: #{tpu_custom_call.1} parent=11 // pred_check_branch
          %290 = sbr.rel (%p288) target = $region28
        $region27: #{tpu_custom_call.1} parent=11 // pred_region
          %s292 = ssub.s32 256, 256
          %293 = vsyncadd [#allocation12], %s292
          %s294 = sshll.u32 [#allocation13], 4
          %s295 = int_to_ptr.vmem [resolvable:$true] %s294
          %300 = dma.hbm_to_vmem [thread:$0]  %s6, 256, %s295, [#allocation12], 64, 64, 4
        $region28: #{tpu_custom_call.1} parent=11 // pred_fallthru
          _
        // Predicated region
        $region29: #{tpu_custom_call.1} parent=11 // pred_check
          %p301 = pneg %p208
        $region30: #{tpu_custom_call.1} parent=11 // pred_check_branch
          %303 = sbr.rel (%p301) target = $region32
        $region31: #{tpu_custom_call.1} parent=11 // pred_region
          _
        $region32: #{tpu_custom_call.1} parent=11 // pred_fallthru
          _
      $region12: #{tpu_custom_call.1} parent=5 // pred_fallthru
        _
      %p304 = scmp.lt.s32.totalorder %s25, 2
      // Predicated region
      $region33: #{tpu_custom_call.1} parent=5 // pred_check
        %p305 = pneg %p304
      $region34: #{tpu_custom_call.1} parent=5 // pred_check_branch
        %307 = sbr.rel (%p305) target = $region36
      $region35: #{tpu_custom_call.1} parent=5 // pred_region
        // Predicated region
        $region37: #{tpu_custom_call.1} parent=35 // pred_check
          %p308 = pneg %p45
        $region38: #{tpu_custom_call.1} parent=35 // pred_check_branch
          %310 = sbr.rel (%p308) target = $region40
        $region39: #{tpu_custom_call.1} parent=35 // pred_region
          %s311 = sand.u32 %s35, 1
          %s312 = scalar_lea.sflag [#allocation3], %s311
          %s313 = sand.u32 %s35, 1
          %s314 = smul.addr %s313, 8
          %s315 = scalar_lea.vmem [#allocation2], %s314
          %s317 = ssub.s32 128, 128
          %318 = vsyncadd %s312, %s317
          %s319 = smul.addr %s25, 128
          %s320 = scalar_lea.hbm %s0, %s319
          %s322 = sshll.u32 %s315, 4
          %s323 = int_to_ptr.vmem [resolvable:$true] %s322
          %325 = dma.hbm_to_vmem [thread:$0]  %s320, 128, %s323, %s312
        $region40: #{tpu_custom_call.1} parent=35 // pred_fallthru
          _
        // Predicated region
        $region41: #{tpu_custom_call.1} parent=35 // pred_check
          %p326 = pneg %p71
        $region42: #{tpu_custom_call.1} parent=35 // pred_check_branch
          %328 = sbr.rel (%p326) target = $region44
        $region43: #{tpu_custom_call.1} parent=35 // pred_region
          %s329 = sand.u32 %s25, 1
          %s330 = scalar_lea.sflag [#allocation6], %s329
          %s331 = sand.u32 %s61, 1
          %s332 = smul.addr %s331, 8
          %s333 = scalar_lea.vmem [#allocation5], %s332
          %s335 = ssub.s32 128, 128
          %336 = vsyncadd %s330, %s335
          %s337 = smul.addr %s25, 128
          %s338 = scalar_lea.hbm %s1, %s337
          %s340 = sshll.u32 %s333, 4
          %s341 = int_to_ptr.vmem [resolvable:$true] %s340
          %343 = dma.hbm_to_vmem [thread:$0]  %s338, 128, %s341, %s330
        $region44: #{tpu_custom_call.1} parent=35 // pred_fallthru
          _
        // Predicated region
        $region45: #{tpu_custom_call.1} parent=35 // pred_check
          %p344 = pneg %p97
        $region46: #{tpu_custom_call.1} parent=35 // pred_check_branch
          %346 = sbr.rel (%p344) target = $region48
        $region47: #{tpu_custom_call.1} parent=35 // pred_region
          %s347 = sand.u32 %s25, 1
          %s348 = scalar_lea.sflag [#allocation6], %s347
          %s349 = sand.u32 %s87, 1
          %s350 = smul.addr %s349, 8
          %s351 = scalar_lea.vmem [#allocation7], %s350
          %s353 = ssub.s32 128, 128
          %354 = vsyncadd %s348, %s353
          %s355 = smul.addr %s25, 128
          %s356 = scalar_lea.hbm %s2, %s355
          %s358 = sshll.u32 %s351, 4
          %s359 = int_to_ptr.vmem [resolvable:$true] %s358
          %361 = dma.hbm_to_vmem [thread:$0]  %s356, 128, %s359, %s348
        $region48: #{tpu_custom_call.1} parent=35 // pred_fallthru
          _
      $region36: #{tpu_custom_call.1} parent=5 // pred_fallthru
        _
      %p362 = scmp.le.s32.totalorder 1, %s25
      %p363 = scmp.lt.s32.totalorder %s25, 3
      %p364 = pnand %p362, %p363
      %p365 = pneg %p364
      // Predicated region
      $region49: #{tpu_custom_call.1} parent=5 // pred_check
        _
      $region50: #{tpu_custom_call.1} parent=5 // pred_check_branch
        %367 = sbr.rel (%p364) target = $region52
      $region51: #{tpu_custom_call.1} parent=5 // pred_region
        %s368 = ssub.s32 %s25, 1
        %s369 = sand.u32 %s38, 1
        %s370 = scalar_lea.sflag [#allocation3], %s369
        %s371 = sand.u32 %s38, 1
        %s372 = smul.addr %s371, 8
        %s373 = scalar_lea.vmem [#allocation2], %s372
        // Predicated region
        $region53: #{tpu_custom_call.1} parent=51 // pred_check
          %p374 = pneg %p51
        $region54: #{tpu_custom_call.1} parent=51 // pred_check_branch
          %376 = sbr.rel (%p374) target = $region56
        $region55: #{tpu_custom_call.1} parent=51 // pred_region
          %377 = dma.done %s370, 128
        $region56: #{tpu_custom_call.1} parent=51 // pred_fallthru
          _
        %s378 = sand.u32 %s30, 1
        %s379 = scalar_lea.sflag [#allocation6], %s378
        %s380 = sand.u32 %s64, 1
        %s381 = smul.addr %s380, 8
        %s382 = scalar_lea.vmem [#allocation5], %s381
        // Predicated region
        $region57: #{tpu_custom_call.1} parent=51 // pred_check
          %p383 = pneg %p77
        $region58: #{tpu_custom_call.1} parent=51 // pred_check_branch
          %385 = sbr.rel (%p383) target = $region60
        $region59: #{tpu_custom_call.1} parent=51 // pred_region
          %386 = dma.done %s379, 128
        $region60: #{tpu_custom_call.1} parent=51 // pred_fallthru
          _
        %s387 = sand.u32 %s30, 1
        %s388 = scalar_lea.sflag [#allocation6], %s387
        %s389 = sand.u32 %s90, 1
        %s390 = smul.addr %s389, 8
        %s391 = scalar_lea.vmem [#allocation7], %s390
        // Predicated region
        $region61: #{tpu_custom_call.1} parent=51 // pred_check
          %p392 = pneg %p103
        $region62: #{tpu_custom_call.1} parent=51 // pred_check_branch
          %394 = sbr.rel (%p392) target = $region64
        $region63: #{tpu_custom_call.1} parent=51 // pred_region
          %395 = dma.done %s388, 128
        $region64: #{tpu_custom_call.1} parent=51 // pred_fallthru
          _
        // Predicated region
        $region65: #{tpu_custom_call.1} parent=51 // pred_check
          %p396 = pneg %p124
        $region66: #{tpu_custom_call.1} parent=51 // pred_check_branch
          %398 = sbr.rel (%p396) target = $region68
        $region67: #{tpu_custom_call.1} parent=51 // pred_region
          %399 = dma.done [#allocation9], 256
        $region68: #{tpu_custom_call.1} parent=51 // pred_fallthru
          _
        // Predicated region
        $region69: #{tpu_custom_call.1} parent=51 // pred_check
          %p400 = pneg %p145
        $region70: #{tpu_custom_call.1} parent=51 // pred_check_branch
          %402 = sbr.rel (%p400) target = $region72
        $region71: #{tpu_custom_call.1} parent=51 // pred_region
          %403 = dma.done [#allocation9], 256
        $region72: #{tpu_custom_call.1} parent=51 // pred_fallthru
          _
        // Predicated region
        $region73: #{tpu_custom_call.1} parent=51 // pred_check
          %p404 = pneg %p166
        $region74: #{tpu_custom_call.1} parent=51 // pred_check_branch
          %406 = sbr.rel (%p404) target = $region76
        $region75: #{tpu_custom_call.1} parent=51 // pred_region
          %407 = dma.done [#allocation12], 256
        $region76: #{tpu_custom_call.1} parent=51 // pred_fallthru
          _
        // Predicated region
        $region77: #{tpu_custom_call.1} parent=51 // pred_check
          %p408 = pneg %p187
        $region78: #{tpu_custom_call.1} parent=51 // pred_check_branch
          %410 = sbr.rel (%p408) target = $region80
        $region79: #{tpu_custom_call.1} parent=51 // pred_region
          %411 = dma.done [#allocation12], 256
        $region80: #{tpu_custom_call.1} parent=51 // pred_fallthru
          _
        %s412 = sand.u32 %s38, 1
        %s413 = scalar_lea.sflag [#allocation3], %s412
        %s414 = sand.u32 %s38, 1
        %s415 = smul.addr %s414, 8
        %s416 = scalar_lea.vmem [#allocation2], %s415
        %p417 = pneg %p51
        %p418 = pneg %p48
        %s419 = sand.u32 %s30, 1
        %s420 = scalar_lea.sflag [#allocation6], %s419
        %s421 = sand.u32 %s64, 1
        %s422 = smul.addr %s421, 8
        %s423 = scalar_lea.vmem [#allocation5], %s422
        %p424 = pneg %p77
        %p425 = pneg %p74
        %s426 = sand.u32 %s30, 1
        %s427 = scalar_lea.sflag [#allocation6], %s426
        %s428 = sand.u32 %s90, 1
        %s429 = smul.addr %s428, 8
        %s430 = scalar_lea.vmem [#allocation7], %s429
        %p431 = pneg %p103
        %p432 = pneg %p100
        %p433 = pneg %p124
        %p434 = pneg %p121
        %p435 = pneg %p145
        %p436 = pneg %p142
        %p437 = pneg %p166
        %p438 = pneg %p163
        %p439 = pneg %p187
        %p440 = pneg %p184
        %p441 = pneg %p208
        %p442 = pneg %p205
        %p443 = pneg %p234
        %p444 = pneg %p231
        %s445 = sand.u32 %s221, 1
        %s446 = scalar_lea.sflag [#allocation4], %s445
        %s447 = sand.u32 %s221, 1
        %s448 = smul.addr %s447, 8
        %s449 = scalar_lea.vmem [#allocation14], %s448
        %v451 = vld [vmem:[%s373] sm:$0xff]
        %v452 = vld [vmem:[%s382] sm:$0xff]
        %v453 = vld [vmem:[%s391] sm:$0xff]
        %v454 = vpack.c.bf16 %v451, %v451
        %v455 = vld [vmem:[#allocation8] sm:$0xf]
        %v456 = vld [vmem:[#allocation8 + $0x4] sm:$0xf]
        %v457 = vld [vmem:[#allocation8 + $0x8] sm:$0xf]
        %v458 = vld [vmem:[#allocation8 + $0xc] sm:$0xf]
        %v463 = vunpack.c.l.b16 %v455
        %v464 = vunpack.c.l.b16 %v456
        %v465 = vunpack.c.l.b16 %v457
        %v466 = vunpack.c.l.b16 %v458
        %v467 = vpack.c.b16 %v464, %v463
        %v468 = vpack.c.b16 %v466, %v465
        %vm469 = vcmask 261120
        %v471 = vsel %vm469, %v454, 0
        %v474 = vsel %vm469, %v467, 0
        %v477 = vsel %vm469, %v468, 0
        %479 = vmatprep.subr.bf16.mxu0 0
        %480 = vmatpush1.bf16.xpose.msra.mxu0 0
        %481 = vmatprep.subr.bf16.mxu0 0
        %482 = vmatpush1.bf16.xpose.msra.mxu0 0
        %483 = vmatprep.subr.bf16.mxu0 0
        %484 = vmatpush1.bf16.xpose.msra.mxu0 0
        %485 = vmatprep.subr.bf16.mxu0 0
        %486 = vmatpush1.bf16.xpose.msra.mxu0 0
        %487 = vmatprep.subr.bf16.mxu0 0
        %488 = vmatpush1.bf16.xpose.msra.mxu0 0
        %489 = vmatprep.subr.bf16.mxu0 0
        %490 = vmatpush1.bf16.xpose.msra.mxu0 0
        %491 = vmatprep.subr.bf16.mxu0 0
        %492 = vmatpush1.bf16.xpose.msra.mxu0 %v477
        %493 = vmatprep.subr.bf16.mxu0 0
        %494 = vmatpush1.bf16.xpose.msra.mxu0 %v474
        %495 = vmatprep.subr.bf16.mxu0 0
        %496 = vmatpush2.bf16.xpose.msra.mxu0 0
        %497 = vmatprep.subr.bf16.mxu0 0
        %498 = vmatpush2.bf16.xpose.msra.mxu0 0
        %499 = vmatprep.subr.bf16.mxu0 0
        %500 = vmatpush2.bf16.xpose.msra.mxu0 0
        %501 = vmatprep.subr.bf16.mxu0 0
        %502 = vmatpush2.bf16.xpose.msra.mxu0 0
        %503 = vmatprep.subr.bf16.mxu0 0
        %504 = vmatpush2.bf16.xpose.msra.mxu0 0
        %505 = vmatprep.subr.bf16.mxu0 0
        %506 = vmatpush2.bf16.xpose.msra.mxu0 0
        %507 = vmatprep.subr.bf16.mxu0 0
        %508 = vmatpush2.bf16.xpose.msra.mxu0 0
        %509 = vmatprep.subr.bf16.mxu0 0
        %510 = vmatpush2.bf16.xpose.msra.mxu0 0
        %511 = vmatprep.mubr.bf16.mxu0 0
        %512 = vmatmul.mubr.bf16.gmra.mxu0 %v471
        %v513 = vpop.f32.mrf.mxu0
        %v514 = vadd.f32 0.0, %v513
        %v515 = vpop.f32.mrf.mxu0
        %v516 = vpop.f32.mrf.mxu0
        %v517 = vpop.f32.mrf.mxu0
        %518 = vdwg.mxu0
        %v519 = vpack.c.bf16 %v452, %v452
        %v520 = vld [vmem:[#allocation10] sm:$0xf]
        %v521 = vld [vmem:[#allocation10 + $0x4] sm:$0xf]
        %v522 = vld [vmem:[#allocation10 + $0x8] sm:$0xf]
        %v523 = vld [vmem:[#allocation10 + $0xc] sm:$0xf]
        %v528 = vunpack.c.l.b16 %v520
        %v529 = vunpack.c.l.b16 %v521
        %v530 = vunpack.c.l.b16 %v522
        %v531 = vunpack.c.l.b16 %v523
        %v532 = vpack.c.b16 %v529, %v528
        %v533 = vpack.c.b16 %v531, %v530
        %v535 = vsel %vm469, %v519, 0
        %v538 = vsel %vm469, %v532, 0
        %v541 = vsel %vm469, %v533, 0
        %543 = vmatprep.subr.bf16.mxu0 0
        %544 = vmatpush1.bf16.xpose.msra.mxu0 0
        %545 = vmatprep.subr.bf16.mxu0 0
        %546 = vmatpush1.bf16.xpose.msra.mxu0 0
        %547 = vmatprep.subr.bf16.mxu0 0
        %548 = vmatpush1.bf16.xpose.msra.mxu0 0
        %549 = vmatprep.subr.bf16.mxu0 0
        %550 = vmatpush1.bf16.xpose.msra.mxu0 0
        %551 = vmatprep.subr.bf16.mxu0 0
        %552 = vmatpush1.bf16.xpose.msra.mxu0 0
        %553 = vmatprep.subr.bf16.mxu0 0
        %554 = vmatpush1.bf16.xpose.msra.mxu0 0
        %555 = vmatprep.subr.bf16.mxu0 0
        %556 = vmatpush1.bf16.xpose.msra.mxu0 %v541
        %557 = vmatprep.subr.bf16.mxu0 0
        %558 = vmatpush1.bf16.xpose.msra.mxu0 %v538
        %559 = vmatprep.subr.bf16.mxu0 0
        %560 = vmatpush2.bf16.xpose.msra.mxu0 0
        %561 = vmatprep.subr.bf16.mxu0 0
        %562 = vmatpush2.bf16.xpose.msra.mxu0 0
        %563 = vmatprep.subr.bf16.mxu0 0
        %564 = vmatpush2.bf16.xpose.msra.mxu0 0
        %565 = vmatprep.subr.bf16.mxu0 0
        %566 = vmatpush2.bf16.xpose.msra.mxu0 0
        %567 = vmatprep.subr.bf16.mxu0 0
        %568 = vmatpush2.bf16.xpose.msra.mxu0 0
        %569 = vmatprep.subr.bf16.mxu0 0
        %570 = vmatpush2.bf16.xpose.msra.mxu0 0
        %571 = vmatprep.subr.bf16.mxu0 0
        %572 = vmatpush2.bf16.xpose.msra.mxu0 0
        %573 = vmatprep.subr.bf16.mxu0 0
        %574 = vmatpush2.bf16.xpose.msra.mxu0 0
        %575 = vmatprep.mubr.bf16.mxu0 0
        %576 = vmatmul.mubr.bf16.gmra.mxu0 %v535
        %v577 = vpop.f32.mrf.mxu0
        %v578 = vadd.f32 0.0, %v577
        %v579 = vpop.f32.mrf.mxu0
        %v580 = vpop.f32.mrf.mxu0
        %v581 = vpop.f32.mrf.mxu0
        %582 = vdwg.mxu0
        %v583 = vpack.c.bf16 %v453, %v453
        %v584 = vld [vmem:[#allocation11] sm:$0xf]
        %v585 = vld [vmem:[#allocation11 + $0x4] sm:$0xf]
        %v586 = vld [vmem:[#allocation11 + $0x8] sm:$0xf]
        %v587 = vld [vmem:[#allocation11 + $0xc] sm:$0xf]
        %v592 = vunpack.c.l.b16 %v584
        %v593 = vunpack.c.l.b16 %v585
        %v594 = vunpack.c.l.b16 %v586
        %v595 = vunpack.c.l.b16 %v587
        %v596 = vpack.c.b16 %v593, %v592
        %v597 = vpack.c.b16 %v595, %v594
        %v599 = vsel %vm469, %v583, 0
        %v602 = vsel %vm469, %v596, 0
        %v605 = vsel %vm469, %v597, 0
        %607 = vmatprep.subr.bf16.mxu0 0
        %608 = vmatpush1.bf16.xpose.msra.mxu0 0
        %609 = vmatprep.subr.bf16.mxu0 0
        %610 = vmatpush1.bf16.xpose.msra.mxu0 0
        %611 = vmatprep.subr.bf16.mxu0 0
        %612 = vmatpush1.bf16.xpose.msra.mxu0 0
        %613 = vmatprep.subr.bf16.mxu0 0
        %614 = vmatpush1.bf16.xpose.msra.mxu0 0
        %615 = vmatprep.subr.bf16.mxu0 0
        %616 = vmatpush1.bf16.xpose.msra.mxu0 0
        %617 = vmatprep.subr.bf16.mxu0 0
        %618 = vmatpush1.bf16.xpose.msra.mxu0 0
        %619 = vmatprep.subr.bf16.mxu0 0
        %620 = vmatpush1.bf16.xpose.msra.mxu0 %v605
        %621 = vmatprep.subr.bf16.mxu0 0
        %622 = vmatpush1.bf16.xpose.msra.mxu0 %v602
        %623 = vmatprep.subr.bf16.mxu0 0
        %624 = vmatpush2.bf16.xpose.msra.mxu0 0
        %625 = vmatprep.subr.bf16.mxu0 0
        %626 = vmatpush2.bf16.xpose.msra.mxu0 0
        %627 = vmatprep.subr.bf16.mxu0 0
        %628 = vmatpush2.bf16.xpose.msra.mxu0 0
        %629 = vmatprep.subr.bf16.mxu0 0
        %630 = vmatpush2.bf16.xpose.msra.mxu0 0
        %631 = vmatprep.subr.bf16.mxu0 0
        %632 = vmatpush2.bf16.xpose.msra.mxu0 0
        %633 = vmatprep.subr.bf16.mxu0 0
        %634 = vmatpush2.bf16.xpose.msra.mxu0 0
        %635 = vmatprep.subr.bf16.mxu0 0
        %636 = vmatpush2.bf16.xpose.msra.mxu0 0
        %637 = vmatprep.subr.bf16.mxu0 0
        %638 = vmatpush2.bf16.xpose.msra.mxu0 0
        %639 = vmatprep.mubr.bf16.mxu0 0
        %640 = vmatmul.mubr.bf16.gmra.mxu0 %v599
        %v641 = vpop.f32.mrf.mxu0
        %v642 = vadd.f32 0.0, %v641
        %v643 = vpop.f32.mrf.mxu0
        %v644 = vpop.f32.mrf.mxu0
        %v645 = vpop.f32.mrf.mxu0
        %646 = vdwg.mxu0
        %v648 = vrot.slane %v514, 4
        %649 = vrot.lane.b32.xlu0 %v648, 4
        %v650 = vpop.permute.xlu0 %649
        %vm652 = vcmask 31744
        %v653 = vsel %vm652, %v514, %v650
        %654 = vrot.lane.b32.xlu0 %v514, 124
        %v655 = vpop.permute.xlu0 %654
        %v658 = vsel %vm652, %v655, %v648
        %659 = vrot.lane.b32.xlu0 %v514, 120
        %v660 = vpop.permute.xlu0 %659
        %662 = vrot.lane.b32.xlu0 %v648, 124
        %v663 = vpop.permute.xlu0 %662
        %v665 = vsel %vm652, %v660, %v663
        %666 = vrot.lane.b32.xlu0 %v514, 116
        %v667 = vpop.permute.xlu0 %666
        %669 = vrot.lane.b32.xlu0 %v648, 120
        %v670 = vpop.permute.xlu0 %669
        %v672 = vsel %vm652, %v667, %v670
        %673 = vrot.lane.b32.xlu0 %v514, 112
        %v674 = vpop.permute.xlu0 %673
        %676 = vrot.lane.b32.xlu0 %v648, 116
        %v677 = vpop.permute.xlu0 %676
        %v679 = vsel %vm652, %v674, %v677
        %680 = vrot.lane.b32.xlu0 %v514, 108
        %v681 = vpop.permute.xlu0 %680
        %683 = vrot.lane.b32.xlu0 %v648, 112
        %v684 = vpop.permute.xlu0 %683
        %v686 = vsel %vm652, %v681, %v684
        %687 = vrot.lane.b32.xlu0 %v514, 104
        %v688 = vpop.permute.xlu0 %687
        %690 = vrot.lane.b32.xlu0 %v648, 108
        %v691 = vpop.permute.xlu0 %690
        %v693 = vsel %vm652, %v688, %v691
        %694 = vrot.lane.b32.xlu0 %v514, 100
        %v695 = vpop.permute.xlu0 %694
        %697 = vrot.lane.b32.xlu0 %v648, 104
        %v698 = vpop.permute.xlu0 %697
        %v700 = vsel %vm652, %v695, %v698
        %v702 = vrot.slane %v578, 4
        %703 = vrot.lane.b32.xlu0 %v702, 4
        %v704 = vpop.permute.xlu0 %703
        %v706 = vsel %vm652, %v578, %v704
        %707 = vrot.lane.b32.xlu0 %v578, 124
        %v708 = vpop.permute.xlu0 %707
        %v711 = vsel %vm652, %v708, %v702
        %712 = vrot.lane.b32.xlu0 %v578, 120
        %v713 = vpop.permute.xlu0 %712
        %715 = vrot.lane.b32.xlu0 %v702, 124
        %v716 = vpop.permute.xlu0 %715
        %v718 = vsel %vm652, %v713, %v716
        %719 = vrot.lane.b32.xlu0 %v578, 116
        %v720 = vpop.permute.xlu0 %719
        %722 = vrot.lane.b32.xlu0 %v702, 120
        %v723 = vpop.permute.xlu0 %722
        %v725 = vsel %vm652, %v720, %v723
        %726 = vrot.lane.b32.xlu0 %v578, 112
        %v727 = vpop.permute.xlu0 %726
        %729 = vrot.lane.b32.xlu0 %v702, 116
        %v730 = vpop.permute.xlu0 %729
        %v732 = vsel %vm652, %v727, %v730
        %733 = vrot.lane.b32.xlu0 %v578, 108
        %v734 = vpop.permute.xlu0 %733
        %736 = vrot.lane.b32.xlu0 %v702, 112
        %v737 = vpop.permute.xlu0 %736
        %v739 = vsel %vm652, %v734, %v737
        %740 = vrot.lane.b32.xlu0 %v578, 104
        %v741 = vpop.permute.xlu0 %740
        %743 = vrot.lane.b32.xlu0 %v702, 108
        %v744 = vpop.permute.xlu0 %743
        %v746 = vsel %vm652, %v741, %v744
        %747 = vrot.lane.b32.xlu0 %v578, 100
        %v748 = vpop.permute.xlu0 %747
        %750 = vrot.lane.b32.xlu0 %v702, 104
        %v751 = vpop.permute.xlu0 %750
        %v753 = vsel %vm652, %v748, %v751
        %v754 = vmul.f32 %v706, 0.5
        %v755 = vmul.f32 %v711, 0.5
        %v756 = vmul.f32 %v718, 0.5
        %v757 = vmul.f32 %v725, 0.5
        %v758 = vmul.f32 %v732, 0.5
        %v759 = vmul.f32 %v739, 0.5
        %v760 = vmul.f32 %v746, 0.5
        %v761 = vmul.f32 %v753, 0.5
        %v763 = vrot.slane %v642, 4
        %764 = vrot.lane.b32.xlu0 %v763, 4
        %v765 = vpop.permute.xlu0 %764
        %v767 = vsel %vm652, %v642, %v765
        %768 = vrot.lane.b32.xlu0 %v642, 124
        %v769 = vpop.permute.xlu0 %768
        %v772 = vsel %vm652, %v769, %v763
        %773 = vrot.lane.b32.xlu0 %v642, 120
        %v774 = vpop.permute.xlu0 %773
        %776 = vrot.lane.b32.xlu0 %v763, 124
        %v777 = vpop.permute.xlu0 %776
        %v779 = vsel %vm652, %v774, %v777
        %780 = vrot.lane.b32.xlu0 %v642, 116
        %v781 = vpop.permute.xlu0 %780
        %783 = vrot.lane.b32.xlu0 %v763, 120
        %v784 = vpop.permute.xlu0 %783
        %v786 = vsel %vm652, %v781, %v784
        %787 = vrot.lane.b32.xlu0 %v642, 112
        %v788 = vpop.permute.xlu0 %787
        %790 = vrot.lane.b32.xlu0 %v763, 116
        %v791 = vpop.permute.xlu0 %790
        %v793 = vsel %vm652, %v788, %v791
        %794 = vrot.lane.b32.xlu0 %v642, 108
        %v795 = vpop.permute.xlu0 %794
        %797 = vrot.lane.b32.xlu0 %v763, 112
        %v798 = vpop.permute.xlu0 %797
        %v800 = vsel %vm652, %v795, %v798
        %801 = vrot.lane.b32.xlu0 %v642, 104
        %v802 = vpop.permute.xlu0 %801
        %804 = vrot.lane.b32.xlu0 %v763, 108
        %v805 = vpop.permute.xlu0 %804
        %v807 = vsel %vm652, %v802, %v805
        %808 = vrot.lane.b32.xlu0 %v642, 100
        %v809 = vpop.permute.xlu0 %808
        %811 = vrot.lane.b32.xlu0 %v763, 104
        %v812 = vpop.permute.xlu0 %811
        %v814 = vsel %vm652, %v809, %v812
        %v815 = vmul.f32 %v767, 0.5
        %v816 = vmul.f32 %v772, 0.5
        %v817 = vmul.f32 %v779, 0.5
        %v818 = vmul.f32 %v786, 0.5
        %v819 = vmul.f32 %v793, 0.5
        %v820 = vmul.f32 %v800, 0.5
        %v821 = vmul.f32 %v807, 0.5
        %v822 = vmul.f32 %v814, 0.5
        %v823 = vpack.c.bf16 %v653, %v653
        %v824 = vpack.c.bf16 %v658, %v658
        %v825 = vpack.c.bf16 %v665, %v665
        %v826 = vpack.c.bf16 %v672, %v672
        %v827 = vpack.c.bf16 %v679, %v679
        %v828 = vpack.c.bf16 %v686, %v686
        %v829 = vpack.c.bf16 %v693, %v693
        %v830 = vpack.c.bf16 %v700, %v700
        %v831 = vpack.c.bf16 %v754, %v754
        %v832 = vpack.c.bf16 %v755, %v755
        %v833 = vpack.c.bf16 %v756, %v756
        %v834 = vpack.c.bf16 %v757, %v757
        %v835 = vpack.c.bf16 %v758, %v758
        %v836 = vpack.c.bf16 %v759, %v759
        %v837 = vpack.c.bf16 %v760, %v760
        %v838 = vpack.c.bf16 %v761, %v761
        %839 = vxpose.xlu0.c.b16.start [1/8] %v831, 128
        %840 = vxpose.xlu0.c.b16.cont [2/8] 0, 128
        %841 = vxpose.xlu0.c.b16.cont [3/8] 0, 128
        %842 = vxpose.xlu0.c.b16.cont [4/8] 0, 128
        %843 = vxpose.xlu0.c.b16.cont [5/8] 0, 128
        %844 = vxpose.xlu0.c.b16.cont [6/8] 0, 128
        %845 = vxpose.xlu0.c.b16.cont [7/8] 0, 128
        %846 = vxpose.xlu0.c.b16.end [8/8] 0, 128
        %v847 = vpop.trf.xlu0
        %v848 = vpop.trf.xlu0
        %v849 = vpop.trf.xlu0
        %v850 = vpop.trf.xlu0
        %v851 = vpop.trf.xlu0
        %v852 = vpop.trf.xlu0
        %v853 = vpop.trf.xlu0
        %v854 = vpop.trf.xlu0
        %v856 = vsel %vm652, %v847, 0
        %vm858 = vcmask 1041408
        %v860 = vsel %vm858, %v823, 0
        %862 = vmatprep.subr.bf16.mxu0 0
        %863 = vmatpush1.bf16.msra.mxu0 0
        %864 = vmatprep.subr.bf16.mxu0 0
        %865 = vmatpush1.bf16.msra.mxu0 0
        %866 = vmatprep.subr.bf16.mxu0 0
        %867 = vmatpush1.bf16.msra.mxu0 0
        %868 = vmatprep.subr.bf16.mxu0 0
        %869 = vmatpush1.bf16.msra.mxu0 0
        %870 = vmatprep.subr.bf16.mxu0 0
        %871 = vmatpush1.bf16.msra.mxu0 0
        %872 = vmatprep.subr.bf16.mxu0 0
        %873 = vmatpush1.bf16.msra.mxu0 0
        %874 = vmatprep.subr.bf16.mxu0 0
        %875 = vmatpush1.bf16.msra.mxu0 0
        %876 = vmatprep.subr.bf16.mxu0 0
        %877 = vmatpush1.bf16.msra.mxu0 %v860
        %878 = vmatprep.subr.bf16.mxu0 0
        %879 = vmatpush2.bf16.msra.mxu0 0
        %880 = vmatprep.subr.bf16.mxu0 0
        %881 = vmatpush2.bf16.msra.mxu0 0
        %882 = vmatprep.subr.bf16.mxu0 0
        %883 = vmatpush2.bf16.msra.mxu0 0
        %884 = vmatprep.subr.bf16.mxu0 0
        %885 = vmatpush2.bf16.msra.mxu0 0
        %886 = vmatprep.subr.bf16.mxu0 0
        %887 = vmatpush2.bf16.msra.mxu0 0
        %888 = vmatprep.subr.bf16.mxu0 0
        %889 = vmatpush2.bf16.msra.mxu0 0
        %890 = vmatprep.subr.bf16.mxu0 0
        %891 = vmatpush2.bf16.msra.mxu0 0
        %892 = vmatprep.subr.bf16.mxu0 0
        %893 = vmatpush2.bf16.msra.mxu0 0
        %894 = vmatprep.mubr.bf16.mxu0 0
        %895 = vmatmul.mubr.bf16.gmra.mxu0 %v856
        %v896 = vpop.f32.mrf.mxu0
        %v897 = vadd.f32 0.0, %v896
        %v898 = vpop.f32.mrf.mxu0
        %v899 = vpop.f32.mrf.mxu0
        %v900 = vpop.f32.mrf.mxu0
        %901 = vdwg.mxu0
        %902 = vxpose.xlu0.c.b16.start [1/8] %v832, 128
        %903 = vxpose.xlu0.c.b16.cont [2/8] 0, 128
        %904 = vxpose.xlu0.c.b16.cont [3/8] 0, 128
        %905 = vxpose.xlu0.c.b16.cont [4/8] 0, 128
        %906 = vxpose.xlu0.c.b16.cont [5/8] 0, 128
        %907 = vxpose.xlu0.c.b16.cont [6/8] 0, 128
        %908 = vxpose.xlu0.c.b16.cont [7/8] 0, 128
        %909 = vxpose.xlu0.c.b16.end [8/8] 0, 128
        %v910 = vpop.trf.xlu0
        %v911 = vpop.trf.xlu0
        %v912 = vpop.trf.xlu0
        %v913 = vpop.trf.xlu0
        %v914 = vpop.trf.xlu0
        %v915 = vpop.trf.xlu0
        %v916 = vpop.trf.xlu0
        %v917 = vpop.trf.xlu0
        %v919 = vsel %vm652, %v910, 0
        %v922 = vsel %vm858, %v824, 0
        %924 = vmatprep.subr.bf16.mxu0 0
        %925 = vmatpush1.bf16.msra.mxu0 0
        %926 = vmatprep.subr.bf16.mxu0 0
        %927 = vmatpush1.bf16.msra.mxu0 0
        %928 = vmatprep.subr.bf16.mxu0 0
        %929 = vmatpush1.bf16.msra.mxu0 0
        %930 = vmatprep.subr.bf16.mxu0 0
        %931 = vmatpush1.bf16.msra.mxu0 0
        %932 = vmatprep.subr.bf16.mxu0 0
        %933 = vmatpush1.bf16.msra.mxu0 0
        %934 = vmatprep.subr.bf16.mxu0 0
        %935 = vmatpush1.bf16.msra.mxu0 0
        %936 = vmatprep.subr.bf16.mxu0 0
        %937 = vmatpush1.bf16.msra.mxu0 0
        %938 = vmatprep.subr.bf16.mxu0 0
        %939 = vmatpush1.bf16.msra.mxu0 %v922
        %940 = vmatprep.subr.bf16.mxu0 0
        %941 = vmatpush2.bf16.msra.mxu0 0
        %942 = vmatprep.subr.bf16.mxu0 0
        %943 = vmatpush2.bf16.msra.mxu0 0
        %944 = vmatprep.subr.bf16.mxu0 0
        %945 = vmatpush2.bf16.msra.mxu0 0
        %946 = vmatprep.subr.bf16.mxu0 0
        %947 = vmatpush2.bf16.msra.mxu0 0
        %948 = vmatprep.subr.bf16.mxu0 0
        %949 = vmatpush2.bf16.msra.mxu0 0
        %950 = vmatprep.subr.bf16.mxu0 0
        %951 = vmatpush2.bf16.msra.mxu0 0
        %952 = vmatprep.subr.bf16.mxu0 0
        %953 = vmatpush2.bf16.msra.mxu0 0
        %954 = vmatprep.subr.bf16.mxu0 0
        %955 = vmatpush2.bf16.msra.mxu0 0
        %956 = vmatprep.mubr.bf16.mxu0 0
        %957 = vmatmul.mubr.bf16.gmra.mxu0 %v919
        %v958 = vpop.f32.mrf.mxu0
        %v959 = vadd.f32 0.0, %v958
        %v960 = vpop.f32.mrf.mxu0
        %v961 = vpop.f32.mrf.mxu0
        %v962 = vpop.f32.mrf.mxu0
        %963 = vdwg.mxu0
        %964 = vxpose.xlu0.c.b16.start [1/8] %v833, 128
        %965 = vxpose.xlu0.c.b16.cont [2/8] 0, 128
        %966 = vxpose.xlu0.c.b16.cont [3/8] 0, 128
        %967 = vxpose.xlu0.c.b16.cont [4/8] 0, 128
        %968 = vxpose.xlu0.c.b16.cont [5/8] 0, 128
        %969 = vxpose.xlu0.c.b16.cont [6/8] 0, 128
        %970 = vxpose.xlu0.c.b16.cont [7/8] 0, 128
        %971 = vxpose.xlu0.c.b16.end [8/8] 0, 128
        %v972 = vpop.trf.xlu0
        %v973 = vpop.trf.xlu0
        %v974 = vpop.trf.xlu0
        %v975 = vpop.trf.xlu0
        %v976 = vpop.trf.xlu0
        %v977 = vpop.trf.xlu0
        %v978 = vpop.trf.xlu0
        %v979 = vpop.trf.xlu0
        %v981 = vsel %vm652, %v972, 0
        %v984 = vsel %vm858, %v825, 0
        %986 = vmatprep.subr.bf16.mxu0 0
        %987 = vmatpush1.bf16.msra.mxu0 0
        %988 = vmatprep.subr.bf16.mxu0 0
        %989 = vmatpush1.bf16.msra.mxu0 0
        %990 = vmatprep.subr.bf16.mxu0 0
        %991 = vmatpush1.bf16.msra.mxu0 0
        %992 = vmatprep.subr.bf16.mxu0 0
        %993 = vmatpush1.bf16.msra.mxu0 0
        %994 = vmatprep.subr.bf16.mxu0 0
        %995 = vmatpush1.bf16.msra.mxu0 0
        %996 = vmatprep.subr.bf16.mxu0 0
        %997 = vmatpush1.bf16.msra.mxu0 0
        %998 = vmatprep.subr.bf16.mxu0 0
        %999 = vmatpush1.bf16.msra.mxu0 0
        %1000 = vmatprep.subr.bf16.mxu0 0
        %1001 = vmatpush1.bf16.msra.mxu0 %v984
        %1002 = vmatprep.subr.bf16.mxu0 0
        %1003 = vmatpush2.bf16.msra.mxu0 0
        %1004 = vmatprep.subr.bf16.mxu0 0
        %1005 = vmatpush2.bf16.msra.mxu0 0
        %1006 = vmatprep.subr.bf16.mxu0 0
        %1007 = vmatpush2.bf16.msra.mxu0 0
        %1008 = vmatprep.subr.bf16.mxu0 0
        %1009 = vmatpush2.bf16.msra.mxu0 0
        %1010 = vmatprep.subr.bf16.mxu0 0
        %1011 = vmatpush2.bf16.msra.mxu0 0
        %1012 = vmatprep.subr.bf16.mxu0 0
        %1013 = vmatpush2.bf16.msra.mxu0 0
        %1014 = vmatprep.subr.bf16.mxu0 0
        %1015 = vmatpush2.bf16.msra.mxu0 0
        %1016 = vmatprep.subr.bf16.mxu0 0
        %1017 = vmatpush2.bf16.msra.mxu0 0
        %1018 = vmatprep.mubr.bf16.mxu0 0
        %1019 = vmatmul.mubr.bf16.gmra.mxu0 %v981
        %v1020 = vpop.f32.mrf.mxu0
        %v1021 = vadd.f32 0.0, %v1020
        %v1022 = vpop.f32.mrf.mxu0
        %v1023 = vpop.f32.mrf.mxu0
        %v1024 = vpop.f32.mrf.mxu0
        %1025 = vdwg.mxu0
        %1026 = vxpose.xlu0.c.b16.start [1/8] %v834, 128
        %1027 = vxpose.xlu0.c.b16.cont [2/8] 0, 128
        %1028 = vxpose.xlu0.c.b16.cont [3/8] 0, 128
        %1029 = vxpose.xlu0.c.b16.cont [4/8] 0, 128
        %1030 = vxpose.xlu0.c.b16.cont [5/8] 0, 128
        %1031 = vxpose.xlu0.c.b16.cont [6/8] 0, 128
        %1032 = vxpose.xlu0.c.b16.cont [7/8] 0, 128
        %1033 = vxpose.xlu0.c.b16.end [8/8] 0, 128
        %v1034 = vpop.trf.xlu0
        %v1035 = vpop.trf.xlu0
        %v1036 = vpop.trf.xlu0
        %v1037 = vpop.trf.xlu0
        %v1038 = vpop.trf.xlu0
        %v1039 = vpop.trf.xlu0
        %v1040 = vpop.trf.xlu0
        %v1041 = vpop.trf.xlu0
        %v1043 = vsel %vm652, %v1034, 0
        %v1046 = vsel %vm858, %v826, 0
        %1048 = vmatprep.subr.bf16.mxu0 0
        %1049 = vmatpush1.bf16.msra.mxu0 0
        %1050 = vmatprep.subr.bf16.mxu0 0
        %1051 = vmatpush1.bf16.msra.mxu0 0
        %1052 = vmatprep.subr.bf16.mxu0 0
        %1053 = vmatpush1.bf16.msra.mxu0 0
        %1054 = vmatprep.subr.bf16.mxu0 0
        %1055 = vmatpush1.bf16.msra.mxu0 0
        %1056 = vmatprep.subr.bf16.mxu0 0
        %1057 = vmatpush1.bf16.msra.mxu0 0
        %1058 = vmatprep.subr.bf16.mxu0 0
        %1059 = vmatpush1.bf16.msra.mxu0 0
        %1060 = vmatprep.subr.bf16.mxu0 0
        %1061 = vmatpush1.bf16.msra.mxu0 0
        %1062 = vmatprep.subr.bf16.mxu0 0
        %1063 = vmatpush1.bf16.msra.mxu0 %v1046
        %1064 = vmatprep.subr.bf16.mxu0 0
        %1065 = vmatpush2.bf16.msra.mxu0 0
        %1066 = vmatprep.subr.bf16.mxu0 0
        %1067 = vmatpush2.bf16.msra.mxu0 0
        %1068 = vmatprep.subr.bf16.mxu0 0
        %1069 = vmatpush2.bf16.msra.mxu0 0
        %1070 = vmatprep.subr.bf16.mxu0 0
        %1071 = vmatpush2.bf16.msra.mxu0 0
        %1072 = vmatprep.subr.bf16.mxu0 0
        %1073 = vmatpush2.bf16.msra.mxu0 0
        %1074 = vmatprep.subr.bf16.mxu0 0
        %1075 = vmatpush2.bf16.msra.mxu0 0
        %1076 = vmatprep.subr.bf16.mxu0 0
        %1077 = vmatpush2.bf16.msra.mxu0 0
        %1078 = vmatprep.subr.bf16.mxu0 0
        %1079 = vmatpush2.bf16.msra.mxu0 0
        %1080 = vmatprep.mubr.bf16.mxu0 0
        %1081 = vmatmul.mubr.bf16.gmra.mxu0 %v1043
        %v1082 = vpop.f32.mrf.mxu0
        %v1083 = vadd.f32 0.0, %v1082
        %v1084 = vpop.f32.mrf.mxu0
        %v1085 = vpop.f32.mrf.mxu0
        %v1086 = vpop.f32.mrf.mxu0
        %1087 = vdwg.mxu0
        %1088 = vxpose.xlu0.c.b16.start [1/8] %v835, 128
        %1089 = vxpose.xlu0.c.b16.cont [2/8] 0, 128
        %1090 = vxpose.xlu0.c.b16.cont [3/8] 0, 128
        %1091 = vxpose.xlu0.c.b16.cont [4/8] 0, 128
        %1092 = vxpose.xlu0.c.b16.cont [5/8] 0, 128
        %1093 = vxpose.xlu0.c.b16.cont [6/8] 0, 128
        %1094 = vxpose.xlu0.c.b16.cont [7/8] 0, 128
        %1095 = vxpose.xlu0.c.b16.end [8/8] 0, 128
        %v1096 = vpop.trf.xlu0
        %v1097 = vpop.trf.xlu0
        %v1098 = vpop.trf.xlu0
        %v1099 = vpop.trf.xlu0
        %v1100 = vpop.trf.xlu0
        %v1101 = vpop.trf.xlu0
        %v1102 = vpop.trf.xlu0
        %v1103 = vpop.trf.xlu0
        %v1105 = vsel %vm652, %v1096, 0
        %v1108 = vsel %vm858, %v827, 0
        %1110 = vmatprep.subr.bf16.mxu0 0
        %1111 = vmatpush1.bf16.msra.mxu0 0
        %1112 = vmatprep.subr.bf16.mxu0 0
        %1113 = vmatpush1.bf16.msra.mxu0 0
        %1114 = vmatprep.subr.bf16.mxu0 0
        %1115 = vmatpush1.bf16.msra.mxu0 0
        %1116 = vmatprep.subr.bf16.mxu0 0
        %1117 = vmatpush1.bf16.msra.mxu0 0
        %1118 = vmatprep.subr.bf16.mxu0 0
        %1119 = vmatpush1.bf16.msra.mxu0 0
        %1120 = vmatprep.subr.bf16.mxu0 0
        %1121 = vmatpush1.bf16.msra.mxu0 0
        %1122 = vmatprep.subr.bf16.mxu0 0
        %1123 = vmatpush1.bf16.msra.mxu0 0
        %1124 = vmatprep.subr.bf16.mxu0 0
        %1125 = vmatpush1.bf16.msra.mxu0 %v1108
        %1126 = vmatprep.subr.bf16.mxu0 0
        %1127 = vmatpush2.bf16.msra.mxu0 0
        %1128 = vmatprep.subr.bf16.mxu0 0
        %1129 = vmatpush2.bf16.msra.mxu0 0
        %1130 = vmatprep.subr.bf16.mxu0 0
        %1131 = vmatpush2.bf16.msra.mxu0 0
        %1132 = vmatprep.subr.bf16.mxu0 0
        %1133 = vmatpush2.bf16.msra.mxu0 0
        %1134 = vmatprep.subr.bf16.mxu0 0
        %1135 = vmatpush2.bf16.msra.mxu0 0
        %1136 = vmatprep.subr.bf16.mxu0 0
        %1137 = vmatpush2.bf16.msra.mxu0 0
        %1138 = vmatprep.subr.bf16.mxu0 0
        %1139 = vmatpush2.bf16.msra.mxu0 0
        %1140 = vmatprep.subr.bf16.mxu0 0
        %1141 = vmatpush2.bf16.msra.mxu0 0
        %1142 = vmatprep.mubr.bf16.mxu0 0
        %1143 = vmatmul.mubr.bf16.gmra.mxu0 %v1105
        %v1144 = vpop.f32.mrf.mxu0
        %v1145 = vadd.f32 0.0, %v1144
        %v1146 = vpop.f32.mrf.mxu0
        %v1147 = vpop.f32.mrf.mxu0
        %v1148 = vpop.f32.mrf.mxu0
        %1149 = vdwg.mxu0
        %1150 = vxpose.xlu0.c.b16.start [1/8] %v836, 128
        %1151 = vxpose.xlu0.c.b16.cont [2/8] 0, 128
        %1152 = vxpose.xlu0.c.b16.cont [3/8] 0, 128
        %1153 = vxpose.xlu0.c.b16.cont [4/8] 0, 128
        %1154 = vxpose.xlu0.c.b16.cont [5/8] 0, 128
        %1155 = vxpose.xlu0.c.b16.cont [6/8] 0, 128
        %1156 = vxpose.xlu0.c.b16.cont [7/8] 0, 128
        %1157 = vxpose.xlu0.c.b16.end [8/8] 0, 128
        %v1158 = vpop.trf.xlu0
        %v1159 = vpop.trf.xlu0
        %v1160 = vpop.trf.xlu0
        %v1161 = vpop.trf.xlu0
        %v1162 = vpop.trf.xlu0
        %v1163 = vpop.trf.xlu0
        %v1164 = vpop.trf.xlu0
        %v1165 = vpop.trf.xlu0
        %v1167 = vsel %vm652, %v1158, 0
        %v1170 = vsel %vm858, %v828, 0
        %1172 = vmatprep.subr.bf16.mxu0 0
        %1173 = vmatpush1.bf16.msra.mxu0 0
        %1174 = vmatprep.subr.bf16.mxu0 0
        %1175 = vmatpush1.bf16.msra.mxu0 0
        %1176 = vmatprep.subr.bf16.mxu0 0
        %1177 = vmatpush1.bf16.msra.mxu0 0
        %1178 = vmatprep.subr.bf16.mxu0 0
        %1179 = vmatpush1.bf16.msra.mxu0 0
        %1180 = vmatprep.subr.bf16.mxu0 0
        %1181 = vmatpush1.bf16.msra.mxu0 0
        %1182 = vmatprep.subr.bf16.mxu0 0
        %1183 = vmatpush1.bf16.msra.mxu0 0
        %1184 = vmatprep.subr.bf16.mxu0 0
        %1185 = vmatpush1.bf16.msra.mxu0 0
        %1186 = vmatprep.subr.bf16.mxu0 0
        %1187 = vmatpush1.bf16.msra.mxu0 %v1170
        %1188 = vmatprep.subr.bf16.mxu0 0
        %1189 = vmatpush2.bf16.msra.mxu0 0
        %1190 = vmatprep.subr.bf16.mxu0 0
        %1191 = vmatpush2.bf16.msra.mxu0 0
        %1192 = vmatprep.subr.bf16.mxu0 0
        %1193 = vmatpush2.bf16.msra.mxu0 0
        %1194 = vmatprep.subr.bf16.mxu0 0
        %1195 = vmatpush2.bf16.msra.mxu0 0
        %1196 = vmatprep.subr.bf16.mxu0 0
        %1197 = vmatpush2.bf16.msra.mxu0 0
        %1198 = vmatprep.subr.bf16.mxu0 0
        %1199 = vmatpush2.bf16.msra.mxu0 0
        %1200 = vmatprep.subr.bf16.mxu0 0
        %1201 = vmatpush2.bf16.msra.mxu0 0
        %1202 = vmatprep.subr.bf16.mxu0 0
        %1203 = vmatpush2.bf16.msra.mxu0 0
        %1204 = vmatprep.mubr.bf16.mxu0 0
        %1205 = vmatmul.mubr.bf16.gmra.mxu0 %v1167
        %v1206 = vpop.f32.mrf.mxu0
        %v1207 = vadd.f32 0.0, %v1206
        %v1208 = vpop.f32.mrf.mxu0
        %v1209 = vpop.f32.mrf.mxu0
        %v1210 = vpop.f32.mrf.mxu0
        %1211 = vdwg.mxu0
        %1212 = vxpose.xlu0.c.b16.start [1/8] %v837, 128
        %1213 = vxpose.xlu0.c.b16.cont [2/8] 0, 128
        %1214 = vxpose.xlu0.c.b16.cont [3/8] 0, 128
        %1215 = vxpose.xlu0.c.b16.cont [4/8] 0, 128
        %1216 = vxpose.xlu0.c.b16.cont [5/8] 0, 128
        %1217 = vxpose.xlu0.c.b16.cont [6/8] 0, 128
        %1218 = vxpose.xlu0.c.b16.cont [7/8] 0, 128
        %1219 = vxpose.xlu0.c.b16.end [8/8] 0, 128
        %v1220 = vpop.trf.xlu0
        %v1221 = vpop.trf.xlu0
        %v1222 = vpop.trf.xlu0
        %v1223 = vpop.trf.xlu0
        %v1224 = vpop.trf.xlu0
        %v1225 = vpop.trf.xlu0
        %v1226 = vpop.trf.xlu0
        %v1227 = vpop.trf.xlu0
        %v1229 = vsel %vm652, %v1220, 0
        %v1232 = vsel %vm858, %v829, 0
        %1234 = vmatprep.subr.bf16.mxu0 0
        %1235 = vmatpush1.bf16.msra.mxu0 0
        %1236 = vmatprep.subr.bf16.mxu0 0
        %1237 = vmatpush1.bf16.msra.mxu0 0
        %1238 = vmatprep.subr.bf16.mxu0 0
        %1239 = vmatpush1.bf16.msra.mxu0 0
        %1240 = vmatprep.subr.bf16.mxu0 0
        %1241 = vmatpush1.bf16.msra.mxu0 0
        %1242 = vmatprep.subr.bf16.mxu0 0
        %1243 = vmatpush1.bf16.msra.mxu0 0
        %1244 = vmatprep.subr.bf16.mxu0 0
        %1245 = vmatpush1.bf16.msra.mxu0 0
        %1246 = vmatprep.subr.bf16.mxu0 0
        %1247 = vmatpush1.bf16.msra.mxu0 0
        %1248 = vmatprep.subr.bf16.mxu0 0
        %1249 = vmatpush1.bf16.msra.mxu0 %v1232
        %1250 = vmatprep.subr.bf16.mxu0 0
        %1251 = vmatpush2.bf16.msra.mxu0 0
        %1252 = vmatprep.subr.bf16.mxu0 0
        %1253 = vmatpush2.bf16.msra.mxu0 0
        %1254 = vmatprep.subr.bf16.mxu0 0
        %1255 = vmatpush2.bf16.msra.mxu0 0
        %1256 = vmatprep.subr.bf16.mxu0 0
        %1257 = vmatpush2.bf16.msra.mxu0 0
        %1258 = vmatprep.subr.bf16.mxu0 0
        %1259 = vmatpush2.bf16.msra.mxu0 0
        %1260 = vmatprep.subr.bf16.mxu0 0
        %1261 = vmatpush2.bf16.msra.mxu0 0
        %1262 = vmatprep.subr.bf16.mxu0 0
        %1263 = vmatpush2.bf16.msra.mxu0 0
        %1264 = vmatprep.subr.bf16.mxu0 0
        %1265 = vmatpush2.bf16.msra.mxu0 0
        %1266 = vmatprep.mubr.bf16.mxu0 0
        %1267 = vmatmul.mubr.bf16.gmra.mxu0 %v1229
        %v1268 = vpop.f32.mrf.mxu0
        %v1269 = vadd.f32 0.0, %v1268
        %v1270 = vpop.f32.mrf.mxu0
        %v1271 = vpop.f32.mrf.mxu0
        %v1272 = vpop.f32.mrf.mxu0
        %1273 = vdwg.mxu0
        %1274 = vxpose.xlu0.c.b16.start [1/8] %v838, 128
        %1275 = vxpose.xlu0.c.b16.cont [2/8] 0, 128
        %1276 = vxpose.xlu0.c.b16.cont [3/8] 0, 128
        %1277 = vxpose.xlu0.c.b16.cont [4/8] 0, 128
        %1278 = vxpose.xlu0.c.b16.cont [5/8] 0, 128
        %1279 = vxpose.xlu0.c.b16.cont [6/8] 0, 128
        %1280 = vxpose.xlu0.c.b16.cont [7/8] 0, 128
        %1281 = vxpose.xlu0.c.b16.end [8/8] 0, 128
        %v1282 = vpop.trf.xlu0
        %v1283 = vpop.trf.xlu0
        %v1284 = vpop.trf.xlu0
        %v1285 = vpop.trf.xlu0
        %v1286 = vpop.trf.xlu0
        %v1287 = vpop.trf.xlu0
        %v1288 = vpop.trf.xlu0
        %v1289 = vpop.trf.xlu0
        %v1291 = vsel %vm652, %v1282, 0
        %v1294 = vsel %vm858, %v830, 0
        %1296 = vmatprep.subr.bf16.mxu0 0
        %1297 = vmatpush1.bf16.msra.mxu0 0
        %1298 = vmatprep.subr.bf16.mxu0 0
        %1299 = vmatpush1.bf16.msra.mxu0 0
        %1300 = vmatprep.subr.bf16.mxu0 0
        %1301 = vmatpush1.bf16.msra.mxu0 0
        %1302 = vmatprep.subr.bf16.mxu0 0
        %1303 = vmatpush1.bf16.msra.mxu0 0
        %1304 = vmatprep.subr.bf16.mxu0 0
        %1305 = vmatpush1.bf16.msra.mxu0 0
        %1306 = vmatprep.subr.bf16.mxu0 0
        %1307 = vmatpush1.bf16.msra.mxu0 0
        %1308 = vmatprep.subr.bf16.mxu0 0
        %1309 = vmatpush1.bf16.msra.mxu0 0
        %1310 = vmatprep.subr.bf16.mxu0 0
        %1311 = vmatpush1.bf16.msra.mxu0 %v1294
        %1312 = vmatprep.subr.bf16.mxu0 0
        %1313 = vmatpush2.bf16.msra.mxu0 0
        %1314 = vmatprep.subr.bf16.mxu0 0
        %1315 = vmatpush2.bf16.msra.mxu0 0
        %1316 = vmatprep.subr.bf16.mxu0 0
        %1317 = vmatpush2.bf16.msra.mxu0 0
        %1318 = vmatprep.subr.bf16.mxu0 0
        %1319 = vmatpush2.bf16.msra.mxu0 0
        %1320 = vmatprep.subr.bf16.mxu0 0
        %1321 = vmatpush2.bf16.msra.mxu0 0
        %1322 = vmatprep.subr.bf16.mxu0 0
        %1323 = vmatpush2.bf16.msra.mxu0 0
        %1324 = vmatprep.subr.bf16.mxu0 0
        %1325 = vmatpush2.bf16.msra.mxu0 0
        %1326 = vmatprep.subr.bf16.mxu0 0
        %1327 = vmatpush2.bf16.msra.mxu0 0
        %1328 = vmatprep.mubr.bf16.mxu0 0
        %1329 = vmatmul.mubr.bf16.gmra.mxu0 %v1291
        %v1330 = vpop.f32.mrf.mxu0
        %v1331 = vadd.f32 0.0, %v1330
        %v1332 = vpop.f32.mrf.mxu0
        %v1333 = vpop.f32.mrf.mxu0
        %v1334 = vpop.f32.mrf.mxu0
        %1335 = vdwg.mxu0
        %v1336 = vpack.c.bf16 %v815, %v815
        %v1337 = vpack.c.bf16 %v816, %v816
        %v1338 = vpack.c.bf16 %v817, %v817
        %v1339 = vpack.c.bf16 %v818, %v818
        %v1340 = vpack.c.bf16 %v819, %v819
        %v1341 = vpack.c.bf16 %v820, %v820
        %v1342 = vpack.c.bf16 %v821, %v821
        %v1343 = vpack.c.bf16 %v822, %v822
        %1344 = vxpose.xlu0.c.b16.start [1/8] %v1336, 128
        %1345 = vxpose.xlu0.c.b16.cont [2/8] 0, 128
        %1346 = vxpose.xlu0.c.b16.cont [3/8] 0, 128
        %1347 = vxpose.xlu0.c.b16.cont [4/8] 0, 128
        %1348 = vxpose.xlu0.c.b16.cont [5/8] 0, 128
        %1349 = vxpose.xlu0.c.b16.cont [6/8] 0, 128
        %1350 = vxpose.xlu0.c.b16.cont [7/8] 0, 128
        %1351 = vxpose.xlu0.c.b16.end [8/8] 0, 128
        %v1352 = vpop.trf.xlu0
        %v1353 = vpop.trf.xlu0
        %v1354 = vpop.trf.xlu0
        %v1355 = vpop.trf.xlu0
        %v1356 = vpop.trf.xlu0
        %v1357 = vpop.trf.xlu0
        %v1358 = vpop.trf.xlu0
        %v1359 = vpop.trf.xlu0
        %v1361 = vsel %vm652, %v1352, 0
        %1363 = vmatprep.subr.bf16.mxu0 0
        %1364 = vmatpush1.bf16.msra.mxu0 0
        %1365 = vmatprep.subr.bf16.mxu0 0
        %1366 = vmatpush1.bf16.msra.mxu0 0
        %1367 = vmatprep.subr.bf16.mxu0 0
        %1368 = vmatpush1.bf16.msra.mxu0 0
        %1369 = vmatprep.subr.bf16.mxu0 0
        %1370 = vmatpush1.bf16.msra.mxu0 0
        %1371 = vmatprep.subr.bf16.mxu0 0
        %1372 = vmatpush1.bf16.msra.mxu0 0
        %1373 = vmatprep.subr.bf16.mxu0 0
        %1374 = vmatpush1.bf16.msra.mxu0 0
        %1375 = vmatprep.subr.bf16.mxu0 0
        %1376 = vmatpush1.bf16.msra.mxu0 0
        %1377 = vmatprep.subr.bf16.mxu0 0
        %1378 = vmatpush1.bf16.msra.mxu0 %v860
        %1379 = vmatprep.subr.bf16.mxu0 0
        %1380 = vmatpush2.bf16.msra.mxu0 0
        %1381 = vmatprep.subr.bf16.mxu0 0
        %1382 = vmatpush2.bf16.msra.mxu0 0
        %1383 = vmatprep.subr.bf16.mxu0 0
        %1384 = vmatpush2.bf16.msra.mxu0 0
        %1385 = vmatprep.subr.bf16.mxu0 0
        %1386 = vmatpush2.bf16.msra.mxu0 0
        %1387 = vmatprep.subr.bf16.mxu0 0
        %1388 = vmatpush2.bf16.msra.mxu0 0
        %1389 = vmatprep.subr.bf16.mxu0 0
        %1390 = vmatpush2.bf16.msra.mxu0 0
        %1391 = vmatprep.subr.bf16.mxu0 0
        %1392 = vmatpush2.bf16.msra.mxu0 0
        %1393 = vmatprep.subr.bf16.mxu0 0
        %1394 = vmatpush2.bf16.msra.mxu0 0
        %1395 = vmatprep.mubr.bf16.mxu0 0
        %1396 = vmatmul.mubr.bf16.gmra.mxu0 %v1361
        %v1397 = vpop.f32.mrf.mxu0
        %v1398 = vadd.f32 0.0, %v1397
        %v1399 = vpop.f32.mrf.mxu0
        %v1400 = vpop.f32.mrf.mxu0
        %v1401 = vpop.f32.mrf.mxu0
        %1402 = vdwg.mxu0
        %1403 = vxpose.xlu0.c.b16.start [1/8] %v1337, 128
        %1404 = vxpose.xlu0.c.b16.cont [2/8] 0, 128
        %1405 = vxpose.xlu0.c.b16.cont [3/8] 0, 128
        %1406 = vxpose.xlu0.c.b16.cont [4/8] 0, 128
        %1407 = vxpose.xlu0.c.b16.cont [5/8] 0, 128
        %1408 = vxpose.xlu0.c.b16.cont [6/8] 0, 128
        %1409 = vxpose.xlu0.c.b16.cont [7/8] 0, 128
        %1410 = vxpose.xlu0.c.b16.end [8/8] 0, 128
        %v1411 = vpop.trf.xlu0
        %v1412 = vpop.trf.xlu0
        %v1413 = vpop.trf.xlu0
        %v1414 = vpop.trf.xlu0
        %v1415 = vpop.trf.xlu0
        %v1416 = vpop.trf.xlu0
        %v1417 = vpop.trf.xlu0
        %v1418 = vpop.trf.xlu0
        %v1420 = vsel %vm652, %v1411, 0
        %1422 = vmatprep.subr.bf16.mxu0 0
        %1423 = vmatpush1.bf16.msra.mxu0 0
        %1424 = vmatprep.subr.bf16.mxu0 0
        %1425 = vmatpush1.bf16.msra.mxu0 0
        %1426 = vmatprep.subr.bf16.mxu0 0
        %1427 = vmatpush1.bf16.msra.mxu0 0
        %1428 = vmatprep.subr.bf16.mxu0 0
        %1429 = vmatpush1.bf16.msra.mxu0 0
        %1430 = vmatprep.subr.bf16.mxu0 0
        %1431 = vmatpush1.bf16.msra.mxu0 0
        %1432 = vmatprep.subr.bf16.mxu0 0
        %1433 = vmatpush1.bf16.msra.mxu0 0
        %1434 = vmatprep.subr.bf16.mxu0 0
        %1435 = vmatpush1.bf16.msra.mxu0 0
        %1436 = vmatprep.subr.bf16.mxu0 0
        %1437 = vmatpush1.bf16.msra.mxu0 %v922
        %1438 = vmatprep.subr.bf16.mxu0 0
        %1439 = vmatpush2.bf16.msra.mxu0 0
        %1440 = vmatprep.subr.bf16.mxu0 0
        %1441 = vmatpush2.bf16.msra.mxu0 0
        %1442 = vmatprep.subr.bf16.mxu0 0
        %1443 = vmatpush2.bf16.msra.mxu0 0
        %1444 = vmatprep.subr.bf16.mxu0 0
        %1445 = vmatpush2.bf16.msra.mxu0 0
        %1446 = vmatprep.subr.bf16.mxu0 0
        %1447 = vmatpush2.bf16.msra.mxu0 0
        %1448 = vmatprep.subr.bf16.mxu0 0
        %1449 = vmatpush2.bf16.msra.mxu0 0
        %1450 = vmatprep.subr.bf16.mxu0 0
        %1451 = vmatpush2.bf16.msra.mxu0 0
        %1452 = vmatprep.subr.bf16.mxu0 0
        %1453 = vmatpush2.bf16.msra.mxu0 0
        %1454 = vmatprep.mubr.bf16.mxu0 0
        %1455 = vmatmul.mubr.bf16.gmra.mxu0 %v1420
        %v1456 = vpop.f32.mrf.mxu0
        %v1457 = vadd.f32 0.0, %v1456
        %v1458 = vpop.f32.mrf.mxu0
        %v1459 = vpop.f32.mrf.mxu0
        %v1460 = vpop.f32.mrf.mxu0
        %1461 = vdwg.mxu0
        %1462 = vxpose.xlu0.c.b16.start [1/8] %v1338, 128
        %1463 = vxpose.xlu0.c.b16.cont [2/8] 0, 128
        %1464 = vxpose.xlu0.c.b16.cont [3/8] 0, 128
        %1465 = vxpose.xlu0.c.b16.cont [4/8] 0, 128
        %1466 = vxpose.xlu0.c.b16.cont [5/8] 0, 128
        %1467 = vxpose.xlu0.c.b16.cont [6/8] 0, 128
        %1468 = vxpose.xlu0.c.b16.cont [7/8] 0, 128
        %1469 = vxpose.xlu0.c.b16.end [8/8] 0, 128
        %v1470 = vpop.trf.xlu0
        %v1471 = vpop.trf.xlu0
        %v1472 = vpop.trf.xlu0
        %v1473 = vpop.trf.xlu0
        %v1474 = vpop.trf.xlu0
        %v1475 = vpop.trf.xlu0
        %v1476 = vpop.trf.xlu0
        %v1477 = vpop.trf.xlu0
        %v1479 = vsel %vm652, %v1470, 0
        %1481 = vmatprep.subr.bf16.mxu0 0
        %1482 = vmatpush1.bf16.msra.mxu0 0
        %1483 = vmatprep.subr.bf16.mxu0 0
        %1484 = vmatpush1.bf16.msra.mxu0 0
        %1485 = vmatprep.subr.bf16.mxu0 0
        %1486 = vmatpush1.bf16.msra.mxu0 0
        %1487 = vmatprep.subr.bf16.mxu0 0
        %1488 = vmatpush1.bf16.msra.mxu0 0
        %1489 = vmatprep.subr.bf16.mxu0 0
        %1490 = vmatpush1.bf16.msra.mxu0 0
        %1491 = vmatprep.subr.bf16.mxu0 0
        %1492 = vmatpush1.bf16.msra.mxu0 0
        %1493 = vmatprep.subr.bf16.mxu0 0
        %1494 = vmatpush1.bf16.msra.mxu0 0
        %1495 = vmatprep.subr.bf16.mxu0 0
        %1496 = vmatpush1.bf16.msra.mxu0 %v984
        %1497 = vmatprep.subr.bf16.mxu0 0
        %1498 = vmatpush2.bf16.msra.mxu0 0
        %1499 = vmatprep.subr.bf16.mxu0 0
        %1500 = vmatpush2.bf16.msra.mxu0 0
        %1501 = vmatprep.subr.bf16.mxu0 0
        %1502 = vmatpush2.bf16.msra.mxu0 0
        %1503 = vmatprep.subr.bf16.mxu0 0
        %1504 = vmatpush2.bf16.msra.mxu0 0
        %1505 = vmatprep.subr.bf16.mxu0 0
        %1506 = vmatpush2.bf16.msra.mxu0 0
        %1507 = vmatprep.subr.bf16.mxu0 0
        %1508 = vmatpush2.bf16.msra.mxu0 0
        %1509 = vmatprep.subr.bf16.mxu0 0
        %1510 = vmatpush2.bf16.msra.mxu0 0
        %1511 = vmatprep.subr.bf16.mxu0 0
        %1512 = vmatpush2.bf16.msra.mxu0 0
        %1513 = vmatprep.mubr.bf16.mxu0 0
        %1514 = vmatmul.mubr.bf16.gmra.mxu0 %v1479
        %v1515 = vpop.f32.mrf.mxu0
        %v1516 = vadd.f32 0.0, %v1515
        %v1517 = vpop.f32.mrf.mxu0
        %v1518 = vpop.f32.mrf.mxu0
        %v1519 = vpop.f32.mrf.mxu0
        %1520 = vdwg.mxu0
        %1521 = vxpose.xlu0.c.b16.start [1/8] %v1339, 128
        %1522 = vxpose.xlu0.c.b16.cont [2/8] 0, 128
        %1523 = vxpose.xlu0.c.b16.cont [3/8] 0, 128
        %1524 = vxpose.xlu0.c.b16.cont [4/8] 0, 128
        %1525 = vxpose.xlu0.c.b16.cont [5/8] 0, 128
        %1526 = vxpose.xlu0.c.b16.cont [6/8] 0, 128
        %1527 = vxpose.xlu0.c.b16.cont [7/8] 0, 128
        %1528 = vxpose.xlu0.c.b16.end [8/8] 0, 128
        %v1529 = vpop.trf.xlu0
        %v1530 = vpop.trf.xlu0
        %v1531 = vpop.trf.xlu0
        %v1532 = vpop.trf.xlu0
        %v1533 = vpop.trf.xlu0
        %v1534 = vpop.trf.xlu0
        %v1535 = vpop.trf.xlu0
        %v1536 = vpop.trf.xlu0
        %v1538 = vsel %vm652, %v1529, 0
        %1540 = vmatprep.subr.bf16.mxu0 0
        %1541 = vmatpush1.bf16.msra.mxu0 0
        %1542 = vmatprep.subr.bf16.mxu0 0
        %1543 = vmatpush1.bf16.msra.mxu0 0
        %1544 = vmatprep.subr.bf16.mxu0 0
        %1545 = vmatpush1.bf16.msra.mxu0 0
        %1546 = vmatprep.subr.bf16.mxu0 0
        %1547 = vmatpush1.bf16.msra.mxu0 0
        %1548 = vmatprep.subr.bf16.mxu0 0
        %1549 = vmatpush1.bf16.msra.mxu0 0
        %1550 = vmatprep.subr.bf16.mxu0 0
        %1551 = vmatpush1.bf16.msra.mxu0 0
        %1552 = vmatprep.subr.bf16.mxu0 0
        %1553 = vmatpush1.bf16.msra.mxu0 0
        %1554 = vmatprep.subr.bf16.mxu0 0
        %1555 = vmatpush1.bf16.msra.mxu0 %v1046
        %1556 = vmatprep.subr.bf16.mxu0 0
        %1557 = vmatpush2.bf16.msra.mxu0 0
        %1558 = vmatprep.subr.bf16.mxu0 0
        %1559 = vmatpush2.bf16.msra.mxu0 0
        %1560 = vmatprep.subr.bf16.mxu0 0
        %1561 = vmatpush2.bf16.msra.mxu0 0
        %1562 = vmatprep.subr.bf16.mxu0 0
        %1563 = vmatpush2.bf16.msra.mxu0 0
        %1564 = vmatprep.subr.bf16.mxu0 0
        %1565 = vmatpush2.bf16.msra.mxu0 0
        %1566 = vmatprep.subr.bf16.mxu0 0
        %1567 = vmatpush2.bf16.msra.mxu0 0
        %1568 = vmatprep.subr.bf16.mxu0 0
        %1569 = vmatpush2.bf16.msra.mxu0 0
        %1570 = vmatprep.subr.bf16.mxu0 0
        %1571 = vmatpush2.bf16.msra.mxu0 0
        %1572 = vmatprep.mubr.bf16.mxu0 0
        %1573 = vmatmul.mubr.bf16.gmra.mxu0 %v1538
        %v1574 = vpop.f32.mrf.mxu0
        %v1575 = vadd.f32 0.0, %v1574
        %v1576 = vpop.f32.mrf.mxu0
        %v1577 = vpop.f32.mrf.mxu0
        %v1578 = vpop.f32.mrf.mxu0
        %1579 = vdwg.mxu0
        %1580 = vxpose.xlu0.c.b16.start [1/8] %v1340, 128
        %1581 = vxpose.xlu0.c.b16.cont [2/8] 0, 128
        %1582 = vxpose.xlu0.c.b16.cont [3/8] 0, 128
        %1583 = vxpose.xlu0.c.b16.cont [4/8] 0, 128
        %1584 = vxpose.xlu0.c.b16.cont [5/8] 0, 128
        %1585 = vxpose.xlu0.c.b16.cont [6/8] 0, 128
        %1586 = vxpose.xlu0.c.b16.cont [7/8] 0, 128
        %1587 = vxpose.xlu0.c.b16.end [8/8] 0, 128
        %v1588 = vpop.trf.xlu0
        %v1589 = vpop.trf.xlu0
        %v1590 = vpop.trf.xlu0
        %v1591 = vpop.trf.xlu0
        %v1592 = vpop.trf.xlu0
        %v1593 = vpop.trf.xlu0
        %v1594 = vpop.trf.xlu0
        %v1595 = vpop.trf.xlu0
        %v1597 = vsel %vm652, %v1588, 0
        %1599 = vmatprep.subr.bf16.mxu0 0
        %1600 = vmatpush1.bf16.msra.mxu0 0
        %1601 = vmatprep.subr.bf16.mxu0 0
        %1602 = vmatpush1.bf16.msra.mxu0 0
        %1603 = vmatprep.subr.bf16.mxu0 0
        %1604 = vmatpush1.bf16.msra.mxu0 0
        %1605 = vmatprep.subr.bf16.mxu0 0
        %1606 = vmatpush1.bf16.msra.mxu0 0
        %1607 = vmatprep.subr.bf16.mxu0 0
        %1608 = vmatpush1.bf16.msra.mxu0 0
        %1609 = vmatprep.subr.bf16.mxu0 0
        %1610 = vmatpush1.bf16.msra.mxu0 0
        %1611 = vmatprep.subr.bf16.mxu0 0
        %1612 = vmatpush1.bf16.msra.mxu0 0
        %1613 = vmatprep.subr.bf16.mxu0 0
        %1614 = vmatpush1.bf16.msra.mxu0 %v1108
        %1615 = vmatprep.subr.bf16.mxu0 0
        %1616 = vmatpush2.bf16.msra.mxu0 0
        %1617 = vmatprep.subr.bf16.mxu0 0
        %1618 = vmatpush2.bf16.msra.mxu0 0
        %1619 = vmatprep.subr.bf16.mxu0 0
        %1620 = vmatpush2.bf16.msra.mxu0 0
        %1621 = vmatprep.subr.bf16.mxu0 0
        %1622 = vmatpush2.bf16.msra.mxu0 0
        %1623 = vmatprep.subr.bf16.mxu0 0
        %1624 = vmatpush2.bf16.msra.mxu0 0
        %1625 = vmatprep.subr.bf16.mxu0 0
        %1626 = vmatpush2.bf16.msra.mxu0 0
        %1627 = vmatprep.subr.bf16.mxu0 0
        %1628 = vmatpush2.bf16.msra.mxu0 0
        %1629 = vmatprep.subr.bf16.mxu0 0
        %1630 = vmatpush2.bf16.msra.mxu0 0
        %1631 = vmatprep.mubr.bf16.mxu0 0
        %1632 = vmatmul.mubr.bf16.gmra.mxu0 %v1597
        %v1633 = vpop.f32.mrf.mxu0
        %v1634 = vadd.f32 0.0, %v1633
        %v1635 = vpop.f32.mrf.mxu0
        %v1636 = vpop.f32.mrf.mxu0
        %v1637 = vpop.f32.mrf.mxu0
        %1638 = vdwg.mxu0
        %1639 = vxpose.xlu0.c.b16.start [1/8] %v1341, 128
        %1640 = vxpose.xlu0.c.b16.cont [2/8] 0, 128
        %1641 = vxpose.xlu0.c.b16.cont [3/8] 0, 128
        %1642 = vxpose.xlu0.c.b16.cont [4/8] 0, 128
        %1643 = vxpose.xlu0.c.b16.cont [5/8] 0, 128
        %1644 = vxpose.xlu0.c.b16.cont [6/8] 0, 128
        %1645 = vxpose.xlu0.c.b16.cont [7/8] 0, 128
        %1646 = vxpose.xlu0.c.b16.end [8/8] 0, 128
        %v1647 = vpop.trf.xlu0
        %v1648 = vpop.trf.xlu0
        %v1649 = vpop.trf.xlu0
        %v1650 = vpop.trf.xlu0
        %v1651 = vpop.trf.xlu0
        %v1652 = vpop.trf.xlu0
        %v1653 = vpop.trf.xlu0
        %v1654 = vpop.trf.xlu0
        %v1656 = vsel %vm652, %v1647, 0
        %1658 = vmatprep.subr.bf16.mxu0 0
        %1659 = vmatpush1.bf16.msra.mxu0 0
        %1660 = vmatprep.subr.bf16.mxu0 0
        %1661 = vmatpush1.bf16.msra.mxu0 0
        %1662 = vmatprep.subr.bf16.mxu0 0
        %1663 = vmatpush1.bf16.msra.mxu0 0
        %1664 = vmatprep.subr.bf16.mxu0 0
        %1665 = vmatpush1.bf16.msra.mxu0 0
        %1666 = vmatprep.subr.bf16.mxu0 0
        %1667 = vmatpush1.bf16.msra.mxu0 0
        %1668 = vmatprep.subr.bf16.mxu0 0
        %1669 = vmatpush1.bf16.msra.mxu0 0
        %1670 = vmatprep.subr.bf16.mxu0 0
        %1671 = vmatpush1.bf16.msra.mxu0 0
        %1672 = vmatprep.subr.bf16.mxu0 0
        %1673 = vmatpush1.bf16.msra.mxu0 %v1170
        %1674 = vmatprep.subr.bf16.mxu0 0
        %1675 = vmatpush2.bf16.msra.mxu0 0
        %1676 = vmatprep.subr.bf16.mxu0 0
        %1677 = vmatpush2.bf16.msra.mxu0 0
        %1678 = vmatprep.subr.bf16.mxu0 0
        %1679 = vmatpush2.bf16.msra.mxu0 0
        %1680 = vmatprep.subr.bf16.mxu0 0
        %1681 = vmatpush2.bf16.msra.mxu0 0
        %1682 = vmatprep.subr.bf16.mxu0 0
        %1683 = vmatpush2.bf16.msra.mxu0 0
        %1684 = vmatprep.subr.bf16.mxu0 0
        %1685 = vmatpush2.bf16.msra.mxu0 0
        %1686 = vmatprep.subr.bf16.mxu0 0
        %1687 = vmatpush2.bf16.msra.mxu0 0
        %1688 = vmatprep.subr.bf16.mxu0 0
        %1689 = vmatpush2.bf16.msra.mxu0 0
        %1690 = vmatprep.mubr.bf16.mxu0 0
        %1691 = vmatmul.mubr.bf16.gmra.mxu0 %v1656
        %v1692 = vpop.f32.mrf.mxu0
        %v1693 = vadd.f32 0.0, %v1692
        %v1694 = vpop.f32.mrf.mxu0
        %v1695 = vpop.f32.mrf.mxu0
        %v1696 = vpop.f32.mrf.mxu0
        %1697 = vdwg.mxu0
        %1698 = vxpose.xlu0.c.b16.start [1/8] %v1342, 128
        %1699 = vxpose.xlu0.c.b16.cont [2/8] 0, 128
        %1700 = vxpose.xlu0.c.b16.cont [3/8] 0, 128
        %1701 = vxpose.xlu0.c.b16.cont [4/8] 0, 128
        %1702 = vxpose.xlu0.c.b16.cont [5/8] 0, 128
        %1703 = vxpose.xlu0.c.b16.cont [6/8] 0, 128
        %1704 = vxpose.xlu0.c.b16.cont [7/8] 0, 128
        %1705 = vxpose.xlu0.c.b16.end [8/8] 0, 128
        %v1706 = vpop.trf.xlu0
        %v1707 = vpop.trf.xlu0
        %v1708 = vpop.trf.xlu0
        %v1709 = vpop.trf.xlu0
        %v1710 = vpop.trf.xlu0
        %v1711 = vpop.trf.xlu0
        %v1712 = vpop.trf.xlu0
        %v1713 = vpop.trf.xlu0
        %v1715 = vsel %vm652, %v1706, 0
        %1717 = vmatprep.subr.bf16.mxu0 0
        %1718 = vmatpush1.bf16.msra.mxu0 0
        %1719 = vmatprep.subr.bf16.mxu0 0
        %1720 = vmatpush1.bf16.msra.mxu0 0
        %1721 = vmatprep.subr.bf16.mxu0 0
        %1722 = vmatpush1.bf16.msra.mxu0 0
        %1723 = vmatprep.subr.bf16.mxu0 0
        %1724 = vmatpush1.bf16.msra.mxu0 0
        %1725 = vmatprep.subr.bf16.mxu0 0
        %1726 = vmatpush1.bf16.msra.mxu0 0
        %1727 = vmatprep.subr.bf16.mxu0 0
        %1728 = vmatpush1.bf16.msra.mxu0 0
        %1729 = vmatprep.subr.bf16.mxu0 0
        %1730 = vmatpush1.bf16.msra.mxu0 0
        %1731 = vmatprep.subr.bf16.mxu0 0
        %1732 = vmatpush1.bf16.msra.mxu0 %v1232
        %1733 = vmatprep.subr.bf16.mxu0 0
        %1734 = vmatpush2.bf16.msra.mxu0 0
        %1735 = vmatprep.subr.bf16.mxu0 0
        %1736 = vmatpush2.bf16.msra.mxu0 0
        %1737 = vmatprep.subr.bf16.mxu0 0
        %1738 = vmatpush2.bf16.msra.mxu0 0
        %1739 = vmatprep.subr.bf16.mxu0 0
        %1740 = vmatpush2.bf16.msra.mxu0 0
        %1741 = vmatprep.subr.bf16.mxu0 0
        %1742 = vmatpush2.bf16.msra.mxu0 0
        %1743 = vmatprep.subr.bf16.mxu0 0
        %1744 = vmatpush2.bf16.msra.mxu0 0
        %1745 = vmatprep.subr.bf16.mxu0 0
        %1746 = vmatpush2.bf16.msra.mxu0 0
        %1747 = vmatprep.subr.bf16.mxu0 0
        %1748 = vmatpush2.bf16.msra.mxu0 0
        %1749 = vmatprep.mubr.bf16.mxu0 0
        %1750 = vmatmul.mubr.bf16.gmra.mxu0 %v1715
        %v1751 = vpop.f32.mrf.mxu0
        %v1752 = vadd.f32 0.0, %v1751
        %v1753 = vpop.f32.mrf.mxu0
        %v1754 = vpop.f32.mrf.mxu0
        %v1755 = vpop.f32.mrf.mxu0
        %1756 = vdwg.mxu0
        %1757 = vxpose.xlu0.c.b16.start [1/8] %v1343, 128
        %1758 = vxpose.xlu0.c.b16.cont [2/8] 0, 128
        %1759 = vxpose.xlu0.c.b16.cont [3/8] 0, 128
        %1760 = vxpose.xlu0.c.b16.cont [4/8] 0, 128
        %1761 = vxpose.xlu0.c.b16.cont [5/8] 0, 128
        %1762 = vxpose.xlu0.c.b16.cont [6/8] 0, 128
        %1763 = vxpose.xlu0.c.b16.cont [7/8] 0, 128
        %1764 = vxpose.xlu0.c.b16.end [8/8] 0, 128
        %v1765 = vpop.trf.xlu0
        %v1766 = vpop.trf.xlu0
        %v1767 = vpop.trf.xlu0
        %v1768 = vpop.trf.xlu0
        %v1769 = vpop.trf.xlu0
        %v1770 = vpop.trf.xlu0
        %v1771 = vpop.trf.xlu0
        %v1772 = vpop.trf.xlu0
        %v1774 = vsel %vm652, %v1765, 0
        %1776 = vmatprep.subr.bf16.mxu0 0
        %1777 = vmatpush1.bf16.msra.mxu0 0
        %1778 = vmatprep.subr.bf16.mxu0 0
        %1779 = vmatpush1.bf16.msra.mxu0 0
        %1780 = vmatprep.subr.bf16.mxu0 0
        %1781 = vmatpush1.bf16.msra.mxu0 0
        %1782 = vmatprep.subr.bf16.mxu0 0
        %1783 = vmatpush1.bf16.msra.mxu0 0
        %1784 = vmatprep.subr.bf16.mxu0 0
        %1785 = vmatpush1.bf16.msra.mxu0 0
        %1786 = vmatprep.subr.bf16.mxu0 0
        %1787 = vmatpush1.bf16.msra.mxu0 0
        %1788 = vmatprep.subr.bf16.mxu0 0
        %1789 = vmatpush1.bf16.msra.mxu0 0
        %1790 = vmatprep.subr.bf16.mxu0 0
        %1791 = vmatpush1.bf16.msra.mxu0 %v1294
        %1792 = vmatprep.subr.bf16.mxu0 0
        %1793 = vmatpush2.bf16.msra.mxu0 0
        %1794 = vmatprep.subr.bf16.mxu0 0
        %1795 = vmatpush2.bf16.msra.mxu0 0
        %1796 = vmatprep.subr.bf16.mxu0 0
        %1797 = vmatpush2.bf16.msra.mxu0 0
        %1798 = vmatprep.subr.bf16.mxu0 0
        %1799 = vmatpush2.bf16.msra.mxu0 0
        %1800 = vmatprep.subr.bf16.mxu0 0
        %1801 = vmatpush2.bf16.msra.mxu0 0
        %1802 = vmatprep.subr.bf16.mxu0 0
        %1803 = vmatpush2.bf16.msra.mxu0 0
        %1804 = vmatprep.subr.bf16.mxu0 0
        %1805 = vmatpush2.bf16.msra.mxu0 0
        %1806 = vmatprep.subr.bf16.mxu0 0
        %1807 = vmatpush2.bf16.msra.mxu0 0
        %1808 = vmatprep.mubr.bf16.mxu0 0
        %1809 = vmatmul.mubr.bf16.gmra.mxu0 %v1774
        %v1810 = vpop.f32.mrf.mxu0
        %v1811 = vadd.f32 0.0, %v1810
        %v1812 = vpop.f32.mrf.mxu0
        %v1813 = vpop.f32.mrf.mxu0
        %v1814 = vpop.f32.mrf.mxu0
        %1815 = vdwg.mxu0
        %vm1816 = vcmask 64512
        %v1817 = vsel %vm1816, %v897, -inf
        %1818 = vmax.xlane.f32.xlu0 %v1817
        %v1819 = vpop.xlane.xlu0 %1818
        %v1820 = vsel %vm1816, %v959, -inf
        %1821 = vmax.xlane.f32.xlu0 %v1820
        %v1822 = vpop.xlane.xlu0 %1821
        %v1823 = vsel %vm1816, %v1021, -inf
        %1824 = vmax.xlane.f32.xlu0 %v1823
        %v1825 = vpop.xlane.xlu0 %1824
        %v1826 = vsel %vm1816, %v1083, -inf
        %1827 = vmax.xlane.f32.xlu0 %v1826
        %v1828 = vpop.xlane.xlu0 %1827
        %v1829 = vsel %vm1816, %v1145, -inf
        %1830 = vmax.xlane.f32.xlu0 %v1829
        %v1831 = vpop.xlane.xlu0 %1830
        %v1832 = vsel %vm1816, %v1207, -inf
        %1833 = vmax.xlane.f32.xlu0 %v1832
        %v1834 = vpop.xlane.xlu0 %1833
        %v1835 = vsel %vm1816, %v1269, -inf
        %1836 = vmax.xlane.f32.xlu0 %v1835
        %v1837 = vpop.xlane.xlu0 %1836
        %v1838 = vsel %vm1816, %v1331, -inf
        %1839 = vmax.xlane.f32.xlu0 %v1838
        %v1840 = vpop.xlane.xlu0 %1839
        %v1841 = vsub.f32 %v897, %v1819
        %v1842 = vsub.f32 %v959, %v1822
        %v1843 = vsub.f32 %v1021, %v1825
        %v1844 = vsub.f32 %v1083, %v1828
        %v1845 = vsub.f32 %v1145, %v1831
        %v1846 = vsub.f32 %v1207, %v1834
        %v1847 = vsub.f32 %v1269, %v1837
        %v1848 = vsub.f32 %v1331, %v1840
        %v1849 = vmul.f32 %v1841, 1.442695
        %v1850 = vpow.pop %v1849
        %v1851 = vmul.f32 %v1842, 1.442695
        %v1852 = vpow.pop %v1851
        %v1853 = vmul.f32 %v1843, 1.442695
        %v1854 = vpow.pop %v1853
        %v1855 = vmul.f32 %v1844, 1.442695
        %v1856 = vpow.pop %v1855
        %v1857 = vmul.f32 %v1845, 1.442695
        %v1858 = vpow.pop %v1857
        %v1859 = vmul.f32 %v1846, 1.442695
        %v1860 = vpow.pop %v1859
        %v1861 = vmul.f32 %v1847, 1.442695
        %v1862 = vpow.pop %v1861
        %v1863 = vmul.f32 %v1848, 1.442695
        %v1864 = vpow.pop %v1863
        %v1865 = vsel %vm1816, %v1850, 0.0
        %1866 = vadd.xlane.f32.xlu0 %v1865
        %v1867 = vpop.xlane.xlu0 %1866
        %v1868 = vsel %vm1816, %v1852, 0.0
        %1869 = vadd.xlane.f32.xlu0 %v1868
        %v1870 = vpop.xlane.xlu0 %1869
        %v1871 = vsel %vm1816, %v1854, 0.0
        %1872 = vadd.xlane.f32.xlu0 %v1871
        %v1873 = vpop.xlane.xlu0 %1872
        %v1874 = vsel %vm1816, %v1856, 0.0
        %1875 = vadd.xlane.f32.xlu0 %v1874
        %v1876 = vpop.xlane.xlu0 %1875
        %v1877 = vsel %vm1816, %v1858, 0.0
        %1878 = vadd.xlane.f32.xlu0 %v1877
        %v1879 = vpop.xlane.xlu0 %1878
        %v1880 = vsel %vm1816, %v1860, 0.0
        %1881 = vadd.xlane.f32.xlu0 %v1880
        %v1882 = vpop.xlane.xlu0 %1881
        %v1883 = vsel %vm1816, %v1862, 0.0
        %1884 = vadd.xlane.f32.xlu0 %v1883
        %v1885 = vpop.xlane.xlu0 %1884
        %v1886 = vsel %vm1816, %v1864, 0.0
        %1887 = vadd.xlane.f32.xlu0 %v1886
        %v1888 = vpop.xlane.xlu0 %1887
        %v1889 = vmul.f32 %v1867, 2.0
        %v1890 = vmul.f32 %v1870, 2.0
        %v1891 = vmul.f32 %v1873, 2.0
        %v1892 = vmul.f32 %v1876, 2.0
        %v1893 = vmul.f32 %v1879, 2.0
        %v1894 = vmul.f32 %v1882, 2.0
        %v1895 = vmul.f32 %v1885, 2.0
        %v1896 = vmul.f32 %v1888, 2.0
        %v1897 = vrcp.pop %v1889
        %v1898 = vrcp.pop %v1890
        %v1899 = vrcp.pop %v1891
        %v1900 = vrcp.pop %v1892
        %v1901 = vrcp.pop %v1893
        %v1902 = vrcp.pop %v1894
        %v1903 = vrcp.pop %v1895
        %v1904 = vrcp.pop %v1896
        %v1905 = vmul.f32 %v1850, %v1897
        %v1906 = vmul.f32 %v1852, %v1898
        %v1907 = vmul.f32 %v1854, %v1899
        %v1908 = vmul.f32 %v1856, %v1900
        %v1909 = vmul.f32 %v1858, %v1901
        %v1910 = vmul.f32 %v1860, %v1902
        %v1911 = vmul.f32 %v1862, %v1903
        %v1912 = vmul.f32 %v1864, %v1904
        %v1913 = vsel %vm1816, %v1398, -inf
        %1914 = vmax.xlane.f32.xlu0 %v1913
        %v1915 = vpop.xlane.xlu0 %1914
        %v1916 = vsel %vm1816, %v1457, -inf
        %1917 = vmax.xlane.f32.xlu0 %v1916
        %v1918 = vpop.xlane.xlu0 %1917
        %v1919 = vsel %vm1816, %v1516, -inf
        %1920 = vmax.xlane.f32.xlu0 %v1919
        %v1921 = vpop.xlane.xlu0 %1920
        %v1922 = vsel %vm1816, %v1575, -inf
        %1923 = vmax.xlane.f32.xlu0 %v1922
        %v1924 = vpop.xlane.xlu0 %1923
        %v1925 = vsel %vm1816, %v1634, -inf
        %1926 = vmax.xlane.f32.xlu0 %v1925
        %v1927 = vpop.xlane.xlu0 %1926
        %v1928 = vsel %vm1816, %v1693, -inf
        %1929 = vmax.xlane.f32.xlu0 %v1928
        %v1930 = vpop.xlane.xlu0 %1929
        %v1931 = vsel %vm1816, %v1752, -inf
        %1932 = vmax.xlane.f32.xlu0 %v1931
        %v1933 = vpop.xlane.xlu0 %1932
        %v1934 = vsel %vm1816, %v1811, -inf
        %1935 = vmax.xlane.f32.xlu0 %v1934
        %v1936 = vpop.xlane.xlu0 %1935
        %v1937 = vsub.f32 %v1398, %v1915
        %v1938 = vsub.f32 %v1457, %v1918
        %v1939 = vsub.f32 %v1516, %v1921
        %v1940 = vsub.f32 %v1575, %v1924
        %v1941 = vsub.f32 %v1634, %v1927
        %v1942 = vsub.f32 %v1693, %v1930
        %v1943 = vsub.f32 %v1752, %v1933
        %v1944 = vsub.f32 %v1811, %v1936
        %v1945 = vmul.f32 %v1937, 1.442695
        %v1946 = vpow.pop %v1945
        %v1947 = vmul.f32 %v1938, 1.442695
        %v1948 = vpow.pop %v1947
        %v1949 = vmul.f32 %v1939, 1.442695
        %v1950 = vpow.pop %v1949
        %v1951 = vmul.f32 %v1940, 1.442695
        %v1952 = vpow.pop %v1951
        %v1953 = vmul.f32 %v1941, 1.442695
        %v1954 = vpow.pop %v1953
        %v1955 = vmul.f32 %v1942, 1.442695
        %v1956 = vpow.pop %v1955
        %v1957 = vmul.f32 %v1943, 1.442695
        %v1958 = vpow.pop %v1957
        %v1959 = vmul.f32 %v1944, 1.442695
        %v1960 = vpow.pop %v1959
        %v1961 = vsel %vm1816, %v1946, 0.0
        %1962 = vadd.xlane.f32.xlu0 %v1961
        %v1963 = vpop.xlane.xlu0 %1962
        %v1964 = vsel %vm1816, %v1948, 0.0
        %1965 = vadd.xlane.f32.xlu0 %v1964
        %v1966 = vpop.xlane.xlu0 %1965
        %v1967 = vsel %vm1816, %v1950, 0.0
        %1968 = vadd.xlane.f32.xlu0 %v1967
        %v1969 = vpop.xlane.xlu0 %1968
        %v1970 = vsel %vm1816, %v1952, 0.0
        %1971 = vadd.xlane.f32.xlu0 %v1970
        %v1972 = vpop.xlane.xlu0 %1971
        %v1973 = vsel %vm1816, %v1954, 0.0
        %1974 = vadd.xlane.f32.xlu0 %v1973
        %v1975 = vpop.xlane.xlu0 %1974
        %v1976 = vsel %vm1816, %v1956, 0.0
        %1977 = vadd.xlane.f32.xlu0 %v1976
        %v1978 = vpop.xlane.xlu0 %1977
        %v1979 = vsel %vm1816, %v1958, 0.0
        %1980 = vadd.xlane.f32.xlu0 %v1979
        %v1981 = vpop.xlane.xlu0 %1980
        %v1982 = vsel %vm1816, %v1960, 0.0
        %1983 = vadd.xlane.f32.xlu0 %v1982
        %v1984 = vpop.xlane.xlu0 %1983
        %v1985 = vmul.f32 %v1963, 2.0
        %v1986 = vmul.f32 %v1966, 2.0
        %v1987 = vmul.f32 %v1969, 2.0
        %v1988 = vmul.f32 %v1972, 2.0
        %v1989 = vmul.f32 %v1975, 2.0
        %v1990 = vmul.f32 %v1978, 2.0
        %v1991 = vmul.f32 %v1981, 2.0
        %v1992 = vmul.f32 %v1984, 2.0
        %v1993 = vrcp.pop %v1985
        %v1994 = vrcp.pop %v1986
        %v1995 = vrcp.pop %v1987
        %v1996 = vrcp.pop %v1988
        %v1997 = vrcp.pop %v1989
        %v1998 = vrcp.pop %v1990
        %v1999 = vrcp.pop %v1991
        %v2000 = vrcp.pop %v1992
        %v2001 = vmul.f32 %v1946, %v1993
        %v2002 = vmul.f32 %v1948, %v1994
        %v2003 = vmul.f32 %v1950, %v1995
        %v2004 = vmul.f32 %v1952, %v1996
        %v2005 = vmul.f32 %v1954, %v1997
        %v2006 = vmul.f32 %v1956, %v1998
        %v2007 = vmul.f32 %v1958, %v1999
        %v2008 = vmul.f32 %v1960, %v2000
        %v2009 = vadd.f32 %v1905, %v2001
        %v2010 = vadd.f32 %v1906, %v2002
        %v2011 = vadd.f32 %v1907, %v2003
        %v2012 = vadd.f32 %v1908, %v2004
        %v2013 = vadd.f32 %v1909, %v2005
        %v2014 = vadd.f32 %v1910, %v2006
        %v2015 = vadd.f32 %v1911, %v2007
        %v2016 = vadd.f32 %v1912, %v2008
        %v2017 = vpack.c.bf16 %v2009, %v2009
        %v2018 = vpack.c.bf16 %v2010, %v2010
        %v2019 = vpack.c.bf16 %v2011, %v2011
        %v2020 = vpack.c.bf16 %v2012, %v2012
        %v2021 = vpack.c.bf16 %v2013, %v2013
        %v2022 = vpack.c.bf16 %v2014, %v2014
        %v2023 = vpack.c.bf16 %v2015, %v2015
        %v2024 = vpack.c.bf16 %v2016, %v2016
        %v2026 = vsel %vm1816, %v2017, 0
        %v2028 = vsel %vm1816, %v823, 0
        %2030 = vmatprep.subr.bf16.mxu0 0
        %2031 = vmatpush1.bf16.xpose.msra.mxu0 0
        %2032 = vmatprep.subr.bf16.mxu0 0
        %2033 = vmatpush1.bf16.xpose.msra.mxu0 0
        %2034 = vmatprep.subr.bf16.mxu0 0
        %2035 = vmatpush1.bf16.xpose.msra.mxu0 0
        %2036 = vmatprep.subr.bf16.mxu0 0
        %2037 = vmatpush1.bf16.xpose.msra.mxu0 0
        %2038 = vmatprep.subr.bf16.mxu0 0
        %2039 = vmatpush1.bf16.xpose.msra.mxu0 0
        %2040 = vmatprep.subr.bf16.mxu0 0
        %2041 = vmatpush1.bf16.xpose.msra.mxu0 0
        %2042 = vmatprep.subr.bf16.mxu0 0
        %2043 = vmatpush1.bf16.xpose.msra.mxu0 0
        %2044 = vmatprep.subr.bf16.mxu0 0
        %2045 = vmatpush1.bf16.xpose.msra.mxu0 %v2028
        %2046 = vmatprep.subr.bf16.mxu0 0
        %2047 = vmatpush2.bf16.xpose.msra.mxu0 0
        %2048 = vmatprep.subr.bf16.mxu0 0
        %2049 = vmatpush2.bf16.xpose.msra.mxu0 0
        %2050 = vmatprep.subr.bf16.mxu0 0
        %2051 = vmatpush2.bf16.xpose.msra.mxu0 0
        %2052 = vmatprep.subr.bf16.mxu0 0
        %2053 = vmatpush2.bf16.xpose.msra.mxu0 0
        %2054 = vmatprep.subr.bf16.mxu0 0
        %2055 = vmatpush2.bf16.xpose.msra.mxu0 0
        %2056 = vmatprep.subr.bf16.mxu0 0
        %2057 = vmatpush2.bf16.xpose.msra.mxu0 0
        %2058 = vmatprep.subr.bf16.mxu0 0
        %2059 = vmatpush2.bf16.xpose.msra.mxu0 0
        %2060 = vmatprep.subr.bf16.mxu0 0
        %2061 = vmatpush2.bf16.xpose.msra.mxu0 0
        %2062 = vmatprep.mubr.bf16.mxu0 0
        %2063 = vmatmul.mubr.bf16.gmra.mxu0 %v2026
        %v2064 = vpop.f32.mrf.mxu0
        %v2065 = vadd.f32 0.0, %v2064
        %v2066 = vpop.f32.mrf.mxu0
        %v2067 = vpop.f32.mrf.mxu0
        %v2068 = vpop.f32.mrf.mxu0
        %2069 = vdwg.mxu0
        %v2071 = vsel %vm1816, %v2018, 0
        %v2073 = vsel %vm1816, %v824, 0
        %2075 = vmatprep.subr.bf16.mxu0 0
        %2076 = vmatpush1.bf16.xpose.msra.mxu0 0
        %2077 = vmatprep.subr.bf16.mxu0 0
        %2078 = vmatpush1.bf16.xpose.msra.mxu0 0
        %2079 = vmatprep.subr.bf16.mxu0 0
        %2080 = vmatpush1.bf16.xpose.msra.mxu0 0
        %2081 = vmatprep.subr.bf16.mxu0 0
        %2082 = vmatpush1.bf16.xpose.msra.mxu0 0
        %2083 = vmatprep.subr.bf16.mxu0 0
        %2084 = vmatpush1.bf16.xpose.msra.mxu0 0
        %2085 = vmatprep.subr.bf16.mxu0 0
        %2086 = vmatpush1.bf16.xpose.msra.mxu0 0
        %2087 = vmatprep.subr.bf16.mxu0 0
        %2088 = vmatpush1.bf16.xpose.msra.mxu0 0
        %2089 = vmatprep.subr.bf16.mxu0 0
        %2090 = vmatpush1.bf16.xpose.msra.mxu0 %v2073
        %2091 = vmatprep.subr.bf16.mxu0 0
        %2092 = vmatpush2.bf16.xpose.msra.mxu0 0
        %2093 = vmatprep.subr.bf16.mxu0 0
        %2094 = vmatpush2.bf16.xpose.msra.mxu0 0
        %2095 = vmatprep.subr.bf16.mxu0 0
        %2096 = vmatpush2.bf16.xpose.msra.mxu0 0
        %2097 = vmatprep.subr.bf16.mxu0 0
        %2098 = vmatpush2.bf16.xpose.msra.mxu0 0
        %2099 = vmatprep.subr.bf16.mxu0 0
        %2100 = vmatpush2.bf16.xpose.msra.mxu0 0
        %2101 = vmatprep.subr.bf16.mxu0 0
        %2102 = vmatpush2.bf16.xpose.msra.mxu0 0
        %2103 = vmatprep.subr.bf16.mxu0 0
        %2104 = vmatpush2.bf16.xpose.msra.mxu0 0
        %2105 = vmatprep.subr.bf16.mxu0 0
        %2106 = vmatpush2.bf16.xpose.msra.mxu0 0
        %2107 = vmatprep.mubr.bf16.mxu0 0
        %2108 = vmatmul.mubr.bf16.gmra.mxu0 %v2071
        %v2109 = vpop.f32.mrf.mxu0
        %v2110 = vadd.f32 0.0, %v2109
        %v2111 = vpop.f32.mrf.mxu0
        %v2112 = vpop.f32.mrf.mxu0
        %v2113 = vpop.f32.mrf.mxu0
        %2114 = vdwg.mxu0
        %v2116 = vsel %vm1816, %v2019, 0
        %v2118 = vsel %vm1816, %v825, 0
        %2120 = vmatprep.subr.bf16.mxu0 0
        %2121 = vmatpush1.bf16.xpose.msra.mxu0 0
        %2122 = vmatprep.subr.bf16.mxu0 0
        %2123 = vmatpush1.bf16.xpose.msra.mxu0 0
        %2124 = vmatprep.subr.bf16.mxu0 0
        %2125 = vmatpush1.bf16.xpose.msra.mxu0 0
        %2126 = vmatprep.subr.bf16.mxu0 0
        %2127 = vmatpush1.bf16.xpose.msra.mxu0 0
        %2128 = vmatprep.subr.bf16.mxu0 0
        %2129 = vmatpush1.bf16.xpose.msra.mxu0 0
        %2130 = vmatprep.subr.bf16.mxu0 0
        %2131 = vmatpush1.bf16.xpose.msra.mxu0 0
        %2132 = vmatprep.subr.bf16.mxu0 0
        %2133 = vmatpush1.bf16.xpose.msra.mxu0 0
        %2134 = vmatprep.subr.bf16.mxu0 0
        %2135 = vmatpush1.bf16.xpose.msra.mxu0 %v2118
        %2136 = vmatprep.subr.bf16.mxu0 0
        %2137 = vmatpush2.bf16.xpose.msra.mxu0 0
        %2138 = vmatprep.subr.bf16.mxu0 0
        %2139 = vmatpush2.bf16.xpose.msra.mxu0 0
        %2140 = vmatprep.subr.bf16.mxu0 0
        %2141 = vmatpush2.bf16.xpose.msra.mxu0 0
        %2142 = vmatprep.subr.bf16.mxu0 0
        %2143 = vmatpush2.bf16.xpose.msra.mxu0 0
        %2144 = vmatprep.subr.bf16.mxu0 0
        %2145 = vmatpush2.bf16.xpose.msra.mxu0 0
        %2146 = vmatprep.subr.bf16.mxu0 0
        %2147 = vmatpush2.bf16.xpose.msra.mxu0 0
        %2148 = vmatprep.subr.bf16.mxu0 0
        %2149 = vmatpush2.bf16.xpose.msra.mxu0 0
        %2150 = vmatprep.subr.bf16.mxu0 0
        %2151 = vmatpush2.bf16.xpose.msra.mxu0 0
        %2152 = vmatprep.mubr.bf16.mxu0 0
        %2153 = vmatmul.mubr.bf16.gmra.mxu0 %v2116
        %v2154 = vpop.f32.mrf.mxu0
        %v2155 = vadd.f32 0.0, %v2154
        %v2156 = vpop.f32.mrf.mxu0
        %v2157 = vpop.f32.mrf.mxu0
        %v2158 = vpop.f32.mrf.mxu0
        %2159 = vdwg.mxu0
        %v2161 = vsel %vm1816, %v2020, 0
        %v2163 = vsel %vm1816, %v826, 0
        %2165 = vmatprep.subr.bf16.mxu0 0
        %2166 = vmatpush1.bf16.xpose.msra.mxu0 0
        %2167 = vmatprep.subr.bf16.mxu0 0
        %2168 = vmatpush1.bf16.xpose.msra.mxu0 0
        %2169 = vmatprep.subr.bf16.mxu0 0
        %2170 = vmatpush1.bf16.xpose.msra.mxu0 0
        %2171 = vmatprep.subr.bf16.mxu0 0
        %2172 = vmatpush1.bf16.xpose.msra.mxu0 0
        %2173 = vmatprep.subr.bf16.mxu0 0
        %2174 = vmatpush1.bf16.xpose.msra.mxu0 0
        %2175 = vmatprep.subr.bf16.mxu0 0
        %2176 = vmatpush1.bf16.xpose.msra.mxu0 0
        %2177 = vmatprep.subr.bf16.mxu0 0
        %2178 = vmatpush1.bf16.xpose.msra.mxu0 0
        %2179 = vmatprep.subr.bf16.mxu0 0
        %2180 = vmatpush1.bf16.xpose.msra.mxu0 %v2163
        %2181 = vmatprep.subr.bf16.mxu0 0
        %2182 = vmatpush2.bf16.xpose.msra.mxu0 0
        %2183 = vmatprep.subr.bf16.mxu0 0
        %2184 = vmatpush2.bf16.xpose.msra.mxu0 0
        %2185 = vmatprep.subr.bf16.mxu0 0
        %2186 = vmatpush2.bf16.xpose.msra.mxu0 0
        %2187 = vmatprep.subr.bf16.mxu0 0
        %2188 = vmatpush2.bf16.xpose.msra.mxu0 0
        %2189 = vmatprep.subr.bf16.mxu0 0
        %2190 = vmatpush2.bf16.xpose.msra.mxu0 0
        %2191 = vmatprep.subr.bf16.mxu0 0
        %2192 = vmatpush2.bf16.xpose.msra.mxu0 0
        %2193 = vmatprep.subr.bf16.mxu0 0
        %2194 = vmatpush2.bf16.xpose.msra.mxu0 0
        %2195 = vmatprep.subr.bf16.mxu0 0
        %2196 = vmatpush2.bf16.xpose.msra.mxu0 0
        %2197 = vmatprep.mubr.bf16.mxu0 0
        %2198 = vmatmul.mubr.bf16.gmra.mxu0 %v2161
        %v2199 = vpop.f32.mrf.mxu0
        %v2200 = vadd.f32 0.0, %v2199
        %v2201 = vpop.f32.mrf.mxu0
        %v2202 = vpop.f32.mrf.mxu0
        %v2203 = vpop.f32.mrf.mxu0
        %2204 = vdwg.mxu0
        %v2206 = vsel %vm1816, %v2021, 0
        %v2208 = vsel %vm1816, %v827, 0
        %2210 = vmatprep.subr.bf16.mxu0 0
        %2211 = vmatpush1.bf16.xpose.msra.mxu0 0
        %2212 = vmatprep.subr.bf16.mxu0 0
        %2213 = vmatpush1.bf16.xpose.msra.mxu0 0
        %2214 = vmatprep.subr.bf16.mxu0 0
        %2215 = vmatpush1.bf16.xpose.msra.mxu0 0
        %2216 = vmatprep.subr.bf16.mxu0 0
        %2217 = vmatpush1.bf16.xpose.msra.mxu0 0
        %2218 = vmatprep.subr.bf16.mxu0 0
        %2219 = vmatpush1.bf16.xpose.msra.mxu0 0
        %2220 = vmatprep.subr.bf16.mxu0 0
        %2221 = vmatpush1.bf16.xpose.msra.mxu0 0
        %2222 = vmatprep.subr.bf16.mxu0 0
        %2223 = vmatpush1.bf16.xpose.msra.mxu0 0
        %2224 = vmatprep.subr.bf16.mxu0 0
        %2225 = vmatpush1.bf16.xpose.msra.mxu0 %v2208
        %2226 = vmatprep.subr.bf16.mxu0 0
        %2227 = vmatpush2.bf16.xpose.msra.mxu0 0
        %2228 = vmatprep.subr.bf16.mxu0 0
        %2229 = vmatpush2.bf16.xpose.msra.mxu0 0
        %2230 = vmatprep.subr.bf16.mxu0 0
        %2231 = vmatpush2.bf16.xpose.msra.mxu0 0
        %2232 = vmatprep.subr.bf16.mxu0 0
        %2233 = vmatpush2.bf16.xpose.msra.mxu0 0
        %2234 = vmatprep.subr.bf16.mxu0 0
        %2235 = vmatpush2.bf16.xpose.msra.mxu0 0
        %2236 = vmatprep.subr.bf16.mxu0 0
        %2237 = vmatpush2.bf16.xpose.msra.mxu0 0
        %2238 = vmatprep.subr.bf16.mxu0 0
        %2239 = vmatpush2.bf16.xpose.msra.mxu0 0
        %2240 = vmatprep.subr.bf16.mxu0 0
        %2241 = vmatpush2.bf16.xpose.msra.mxu0 0
        %2242 = vmatprep.mubr.bf16.mxu0 0
        %2243 = vmatmul.mubr.bf16.gmra.mxu0 %v2206
        %v2244 = vpop.f32.mrf.mxu0
        %v2245 = vadd.f32 0.0, %v2244
        %v2246 = vpop.f32.mrf.mxu0
        %v2247 = vpop.f32.mrf.mxu0
        %v2248 = vpop.f32.mrf.mxu0
        %2249 = vdwg.mxu0
        %v2251 = vsel %vm1816, %v2022, 0
        %v2253 = vsel %vm1816, %v828, 0
        %2255 = vmatprep.subr.bf16.mxu0 0
        %2256 = vmatpush1.bf16.xpose.msra.mxu0 0
        %2257 = vmatprep.subr.bf16.mxu0 0
        %2258 = vmatpush1.bf16.xpose.msra.mxu0 0
        %2259 = vmatprep.subr.bf16.mxu0 0
        %2260 = vmatpush1.bf16.xpose.msra.mxu0 0
        %2261 = vmatprep.subr.bf16.mxu0 0
        %2262 = vmatpush1.bf16.xpose.msra.mxu0 0
        %2263 = vmatprep.subr.bf16.mxu0 0
        %2264 = vmatpush1.bf16.xpose.msra.mxu0 0
        %2265 = vmatprep.subr.bf16.mxu0 0
        %2266 = vmatpush1.bf16.xpose.msra.mxu0 0
        %2267 = vmatprep.subr.bf16.mxu0 0
        %2268 = vmatpush1.bf16.xpose.msra.mxu0 0
        %2269 = vmatprep.subr.bf16.mxu0 0
        %2270 = vmatpush1.bf16.xpose.msra.mxu0 %v2253
        %2271 = vmatprep.subr.bf16.mxu0 0
        %2272 = vmatpush2.bf16.xpose.msra.mxu0 0
        %2273 = vmatprep.subr.bf16.mxu0 0
        %2274 = vmatpush2.bf16.xpose.msra.mxu0 0
        %2275 = vmatprep.subr.bf16.mxu0 0
        %2276 = vmatpush2.bf16.xpose.msra.mxu0 0
        %2277 = vmatprep.subr.bf16.mxu0 0
        %2278 = vmatpush2.bf16.xpose.msra.mxu0 0
        %2279 = vmatprep.subr.bf16.mxu0 0
        %2280 = vmatpush2.bf16.xpose.msra.mxu0 0
        %2281 = vmatprep.subr.bf16.mxu0 0
        %2282 = vmatpush2.bf16.xpose.msra.mxu0 0
        %2283 = vmatprep.subr.bf16.mxu0 0
        %2284 = vmatpush2.bf16.xpose.msra.mxu0 0
        %2285 = vmatprep.subr.bf16.mxu0 0
        %2286 = vmatpush2.bf16.xpose.msra.mxu0 0
        %2287 = vmatprep.mubr.bf16.mxu0 0
        %2288 = vmatmul.mubr.bf16.gmra.mxu0 %v2251
        %v2289 = vpop.f32.mrf.mxu0
        %v2290 = vadd.f32 0.0, %v2289
        %v2291 = vpop.f32.mrf.mxu0
        %v2292 = vpop.f32.mrf.mxu0
        %v2293 = vpop.f32.mrf.mxu0
        %2294 = vdwg.mxu0
        %v2296 = vsel %vm1816, %v2023, 0
        %v2298 = vsel %vm1816, %v829, 0
        %2300 = vmatprep.subr.bf16.mxu0 0
        %2301 = vmatpush1.bf16.xpose.msra.mxu0 0
        %2302 = vmatprep.subr.bf16.mxu0 0
        %2303 = vmatpush1.bf16.xpose.msra.mxu0 0
        %2304 = vmatprep.subr.bf16.mxu0 0
        %2305 = vmatpush1.bf16.xpose.msra.mxu0 0
        %2306 = vmatprep.subr.bf16.mxu0 0
        %2307 = vmatpush1.bf16.xpose.msra.mxu0 0
        %2308 = vmatprep.subr.bf16.mxu0 0
        %2309 = vmatpush1.bf16.xpose.msra.mxu0 0
        %2310 = vmatprep.subr.bf16.mxu0 0
        %2311 = vmatpush1.bf16.xpose.msra.mxu0 0
        %2312 = vmatprep.subr.bf16.mxu0 0
        %2313 = vmatpush1.bf16.xpose.msra.mxu0 0
        %2314 = vmatprep.subr.bf16.mxu0 0
        %2315 = vmatpush1.bf16.xpose.msra.mxu0 %v2298
        %2316 = vmatprep.subr.bf16.mxu0 0
        %2317 = vmatpush2.bf16.xpose.msra.mxu0 0
        %2318 = vmatprep.subr.bf16.mxu0 0
        %2319 = vmatpush2.bf16.xpose.msra.mxu0 0
        %2320 = vmatprep.subr.bf16.mxu0 0
        %2321 = vmatpush2.bf16.xpose.msra.mxu0 0
        %2322 = vmatprep.subr.bf16.mxu0 0
        %2323 = vmatpush2.bf16.xpose.msra.mxu0 0
        %2324 = vmatprep.subr.bf16.mxu0 0
        %2325 = vmatpush2.bf16.xpose.msra.mxu0 0
        %2326 = vmatprep.subr.bf16.mxu0 0
        %2327 = vmatpush2.bf16.xpose.msra.mxu0 0
        %2328 = vmatprep.subr.bf16.mxu0 0
        %2329 = vmatpush2.bf16.xpose.msra.mxu0 0
        %2330 = vmatprep.subr.bf16.mxu0 0
        %2331 = vmatpush2.bf16.xpose.msra.mxu0 0
        %2332 = vmatprep.mubr.bf16.mxu0 0
        %2333 = vmatmul.mubr.bf16.gmra.mxu0 %v2296
        %v2334 = vpop.f32.mrf.mxu0
        %v2335 = vadd.f32 0.0, %v2334
        %v2336 = vpop.f32.mrf.mxu0
        %v2337 = vpop.f32.mrf.mxu0
        %v2338 = vpop.f32.mrf.mxu0
        %2339 = vdwg.mxu0
        %v2341 = vsel %vm1816, %v2024, 0
        %v2343 = vsel %vm1816, %v830, 0
        %2345 = vmatprep.subr.bf16.mxu0 0
        %2346 = vmatpush1.bf16.xpose.msra.mxu0 0
        %2347 = vmatprep.subr.bf16.mxu0 0
        %2348 = vmatpush1.bf16.xpose.msra.mxu0 0
        %2349 = vmatprep.subr.bf16.mxu0 0
        %2350 = vmatpush1.bf16.xpose.msra.mxu0 0
        %2351 = vmatprep.subr.bf16.mxu0 0
        %2352 = vmatpush1.bf16.xpose.msra.mxu0 0
        %2353 = vmatprep.subr.bf16.mxu0 0
        %2354 = vmatpush1.bf16.xpose.msra.mxu0 0
        %2355 = vmatprep.subr.bf16.mxu0 0
        %2356 = vmatpush1.bf16.xpose.msra.mxu0 0
        %2357 = vmatprep.subr.bf16.mxu0 0
        %2358 = vmatpush1.bf16.xpose.msra.mxu0 0
        %2359 = vmatprep.subr.bf16.mxu0 0
        %2360 = vmatpush1.bf16.xpose.msra.mxu0 %v2343
        %2361 = vmatprep.subr.bf16.mxu0 0
        %2362 = vmatpush2.bf16.xpose.msra.mxu0 0
        %2363 = vmatprep.subr.bf16.mxu0 0
        %2364 = vmatpush2.bf16.xpose.msra.mxu0 0
        %2365 = vmatprep.subr.bf16.mxu0 0
        %2366 = vmatpush2.bf16.xpose.msra.mxu0 0
        %2367 = vmatprep.subr.bf16.mxu0 0
        %2368 = vmatpush2.bf16.xpose.msra.mxu0 0
        %2369 = vmatprep.subr.bf16.mxu0 0
        %2370 = vmatpush2.bf16.xpose.msra.mxu0 0
        %2371 = vmatprep.subr.bf16.mxu0 0
        %2372 = vmatpush2.bf16.xpose.msra.mxu0 0
        %2373 = vmatprep.subr.bf16.mxu0 0
        %2374 = vmatpush2.bf16.xpose.msra.mxu0 0
        %2375 = vmatprep.subr.bf16.mxu0 0
        %2376 = vmatpush2.bf16.xpose.msra.mxu0 0
        %2377 = vmatprep.mubr.bf16.mxu0 0
        %2378 = vmatmul.mubr.bf16.gmra.mxu0 %v2341
        %v2379 = vpop.f32.mrf.mxu0
        %v2380 = vadd.f32 0.0, %v2379
        %v2381 = vpop.f32.mrf.mxu0
        %v2382 = vpop.f32.mrf.mxu0
        %v2383 = vpop.f32.mrf.mxu0
        %2384 = vdwg.mxu0
        %2386 = vrot.lane.b32.xlu0 %v2110, 4
        %v2387 = vpop.permute.xlu0 %2386
        %2390 = vrot.lane.b32.xlu0 %v2155, 8
        %v2391 = vpop.permute.xlu0 %2390
        %2394 = vrot.lane.b32.xlu0 %v2200, 12
        %v2395 = vpop.permute.xlu0 %2394
        %2398 = vrot.lane.b32.xlu0 %v2245, 16
        %v2399 = vpop.permute.xlu0 %2398
        %2402 = vrot.lane.b32.xlu0 %v2290, 20
        %v2403 = vpop.permute.xlu0 %2402
        %2406 = vrot.lane.b32.xlu0 %v2335, 24
        %v2407 = vpop.permute.xlu0 %2406
        %2410 = vrot.lane.b32.xlu0 %v2380, 28
        %v2411 = vpop.permute.xlu0 %2410
        %v2413 = vsel %vm652, %v2065, %v2387
        %v2414 = vsel %vm1816, %v2413, %v2391
        %vm2415 = vcmask 97280
        %v2416 = vsel %vm2415, %v2414, %v2395
        %vm2417 = vcmask 130048
        %v2418 = vsel %vm2417, %v2416, %v2399
        %vm2419 = vcmask 162816
        %v2420 = vsel %vm2419, %v2418, %v2403
        %vm2421 = vcmask 195584
        %v2422 = vsel %vm2421, %v2420, %v2407
        %vm2423 = vcmask 228352
        %v2424 = vsel %vm2423, %v2422, %v2411
        %v2425 = vpack.c.bf16 %v2424, %v2424
        %v2426 = vld [vmem:[#allocation13] sm:$0xf]
        %v2427 = vld [vmem:[#allocation13 + $0x4] sm:$0xf]
        %v2428 = vld [vmem:[#allocation13 + $0x8] sm:$0xf]
        %v2429 = vld [vmem:[#allocation13 + $0xc] sm:$0xf]
        %v2430 = vld [vmem:[%s7] sm:$0x1]
        %v2432 = vlaneseq
        %v2433 = vshrl.u32 %v2432, 7
        %v2434 = vsub.s32 0, %v2433
        %v2435 = vrot.slane %v2430, %v2434
        %v2441 = vunpack.c.l.b16 %v2426
        %v2442 = vunpack.c.l.b16 %v2427
        %v2443 = vunpack.c.l.b16 %v2428
        %v2444 = vunpack.c.l.b16 %v2429
        %v2445 = vpack.c.b16 %v2442, %v2441
        %v2446 = vpack.c.b16 %v2444, %v2443
        %v2448 = vsel %vm469, %v2425, 0
        %v2451 = vsel %vm469, %v2445, 0
        %v2454 = vsel %vm469, %v2446, 0
        %2456 = vmatprep.subr.bf16.mxu0 0
        %2457 = vmatpush1.bf16.xpose.msra.mxu0 0
        %2458 = vmatprep.subr.bf16.mxu0 0
        %2459 = vmatpush1.bf16.xpose.msra.mxu0 0
        %2460 = vmatprep.subr.bf16.mxu0 0
        %2461 = vmatpush1.bf16.xpose.msra.mxu0 0
        %2462 = vmatprep.subr.bf16.mxu0 0
        %2463 = vmatpush1.bf16.xpose.msra.mxu0 0
        %2464 = vmatprep.subr.bf16.mxu0 0
        %2465 = vmatpush1.bf16.xpose.msra.mxu0 0
        %2466 = vmatprep.subr.bf16.mxu0 0
        %2467 = vmatpush1.bf16.xpose.msra.mxu0 0
        %2468 = vmatprep.subr.bf16.mxu0 0
        %2469 = vmatpush1.bf16.xpose.msra.mxu0 %v2454
        %2470 = vmatprep.subr.bf16.mxu0 0
        %2471 = vmatpush1.bf16.xpose.msra.mxu0 %v2451
        %2472 = vmatprep.subr.bf16.mxu0 0
        %2473 = vmatpush2.bf16.xpose.msra.mxu0 0
        %2474 = vmatprep.subr.bf16.mxu0 0
        %2475 = vmatpush2.bf16.xpose.msra.mxu0 0
        %2476 = vmatprep.subr.bf16.mxu0 0
        %2477 = vmatpush2.bf16.xpose.msra.mxu0 0
        %2478 = vmatprep.subr.bf16.mxu0 0
        %2479 = vmatpush2.bf16.xpose.msra.mxu0 0
        %2480 = vmatprep.subr.bf16.mxu0 0
        %2481 = vmatpush2.bf16.xpose.msra.mxu0 0
        %2482 = vmatprep.subr.bf16.mxu0 0
        %2483 = vmatpush2.bf16.xpose.msra.mxu0 0
        %2484 = vmatprep.subr.bf16.mxu0 0
        %2485 = vmatpush2.bf16.xpose.msra.mxu0 0
        %2486 = vmatprep.subr.bf16.mxu0 0
        %2487 = vmatpush2.bf16.xpose.msra.mxu0 0
        %2488 = vmatprep.mubr.bf16.mxu0 0
        %2489 = vmatmul.mubr.bf16.gmra.mxu0 %v2448
        %v2490 = vpop.f32.mrf.mxu0
        %v2491 = vadd.f32 %v2435, %v2490
        %v2492 = vpop.f32.mrf.mxu0
        %v2493 = vpop.f32.mrf.mxu0
        %v2494 = vpop.f32.mrf.mxu0
        %2495 = vdwg.mxu0
        %v2497 = vrot.slane %v2491, 3
        %v2499 = vrot.slane %v2491, 7
        %v2501 = vrot.slane %v2491, 2
        %v2503 = vrot.slane %v2491, 6
        %v2505 = vrot.slane %v2491, 1
        %v2507 = vrot.slane %v2491, 5
        %vm2509 = vcmask 1040384
        %v2510 = vsel %vm2509, %v2491, %v2497
        %v2511 = vsel %vm858, %v2510, %v2499
        %vm2512 = vcmask 1042432
        %v2513 = vsel %vm2512, %v2511, %v2501
        %vm2514 = vcmask 1043456
        %v2515 = vsel %vm2514, %v2513, %v2503
        %vm2516 = vcmask 1044480
        %v2517 = vsel %vm2516, %v2515, %v2505
        %vm2518 = vcmask 1045504
        %v2519 = vsel %vm2518, %v2517, %v2507
        %vm2520 = vcmask 1046528
        %v2521 = vsel %vm2520, %v2519, %v2491
        %2522 = vst.msk [vmem:[%s449] sm:$0xff] %vm469, %v2521
        %s2523 = sand.u32 %s221, 1
        %s2524 = scalar_lea.sflag [#allocation4], %s2523
        %s2525 = sand.u32 %s221, 1
        %s2526 = smul.addr %s2525, 8
        %s2527 = scalar_lea.vmem [#allocation14], %s2526
        // Predicated region
        $region81: #{tpu_custom_call.1} parent=51 // pred_check
          %p2528 = pneg %p231
        $region82: #{tpu_custom_call.1} parent=51 // pred_check_branch
          %2530 = sbr.rel (%p2528) target = $region84
        $region83: #{tpu_custom_call.1} parent=51 // pred_region
          %s2532 = ssub.s32 128, 128
          %2533 = vsyncadd %s2524, %s2532
          %s2534 = smul.addr %s30, 128
          %s2535 = scalar_lea.hbm %s8, %s2534
          %s2537 = sshll.u32 %s2527, 4
          %s2538 = int_to_ptr.vmem [resolvable:$true] %s2537
          %2540 = dma.vmem_to_hbm [thread:$0]  %s2538, 128, %s2535, %s2524
        $region84: #{tpu_custom_call.1} parent=51 // pred_fallthru
          _
      $region52: #{tpu_custom_call.1} parent=5 // pred_fallthru
        _
      %p2541 = scmp.le.s32.totalorder 2, %s25
      // Predicated region
      $region85: #{tpu_custom_call.1} parent=5 // pred_check
        %p2542 = pneg %p2541
      $region86: #{tpu_custom_call.1} parent=5 // pred_check_branch
        %2544 = sbr.rel (%p2542) target = $region88
      $region87: #{tpu_custom_call.1} parent=5 // pred_region
        %s2545 = ssub.s32 %s25, 2
        // Predicated region
        $region89: #{tpu_custom_call.1} parent=87 // pred_check
          %p2546 = pneg %p237
        $region90: #{tpu_custom_call.1} parent=87 // pred_check_branch
          %2548 = sbr.rel (%p2546) target = $region92
        $region91: #{tpu_custom_call.1} parent=87 // pred_region
          %s2549 = sand.u32 %s222, 1
          %s2550 = scalar_lea.sflag [#allocation4], %s2549
          %s2551 = sand.u32 %s222, 1
          %s2552 = smul.addr %s2551, 8
          %s2553 = scalar_lea.vmem [#allocation14], %s2552
          %2554 = dma.done %s2550, 128
        $region92: #{tpu_custom_call.1} parent=87 // pred_fallthru
          _
      $region88: #{tpu_custom_call.1} parent=5 // pred_fallthru
        _
    $region6: #{tpu_custom_call.1} parent=1 // loop_footer
      %s29 = sadd.s32 1, %s25
    $region7: #{tpu_custom_call.1} parent=1 // loop_footer_branch
      %24 = sbr.rel target = $region3
    $region8: #{tpu_custom_call.1} parent=1 // loop_exit
      _
    %2555 = vsyncpa [#allocation3], 1
    %s2556 = scalar_lea.sflag [#allocation3], 1
    %2557 = vsyncpa %s2556, 1
    %2558 = vsyncpa [#allocation6], 1
    %s2559 = scalar_lea.sflag [#allocation6], 1
    %2560 = vsyncpa %s2559, 1
    %2561 = vsyncpa [#allocation9], 1
    %2562 = vsyncpa [#allocation12], 1
    %2563 = vsyncpa [#allocation4], 1
    %s2564 = scalar_lea.sflag [#allocation4], 1
    %2565 = vsyncpa %s2564, 1

</llo_original>
